<compile_context>
chip_gen: v6e
topology: v6e:2x2x1
jax: 0.10.0
libtpu: 0.0.40
codegen_flags: <defaults>
</compile_context>

<pallas_src>
import functools

import jax
import jax.numpy as jnp
from jax.experimental import pallas as pl
from jax.experimental.pallas import tpu as pltpu

EPS = 1e-4  # matches nn.BatchNorm2d(channels, eps=0.0001)

_TAPS = tuple((dy, dx) for dy in (-1, 0, 1) for dx in (-1, 0, 1))


def _bn_elu(v, g, b, inv_n):
    """Training-mode (biased) BN + ELU on a (C, NHW) tile, two-pass variance."""
    mean = jnp.sum(v, axis=1, keepdims=True) * inv_n
    d = v - mean
    var = jnp.sum(d * d, axis=1, keepdims=True) * inv_n
    y = d * (g * jax.lax.rsqrt(var + EPS)) + b
    # ELU(alpha=1)
    return jnp.where(y > 0.0, y, jnp.exp(jnp.minimum(y, 0.0)) - 1.0)


def _im2col(y, col_ref, masks, W, nhw):
    """y: (CP, NHW) f32 -> bf16 im2col (9*CP, NHW) written into col_ref.

    CP is a multiple of 16 so every tap-slab store is a full bf16 (16,128)
    tile store.  `masks` is the hoisted (8, NHW) f32 0/1 halo-mask array.
    """
    cp = y.shape[0]
    for t, (dy, dx) in enumerate(_TAPS):
        off = dy * W + dx               # flat lane offset of this conv tap
        sh = y if off == 0 else pltpu.roll(y, (-off) % nhw, axis=1)
        if not (dy == 0 and dx == 0):
            m_idx = t if t < 4 else t - 1   # center tap (t==4) has no mask
            sh = sh * masks[m_idx:m_idx + 1, :]
        col_ref[t * cp:(t + 1) * cp, :] = sh.astype(jnp.bfloat16)
    return col_ref[...]


def _resblock_kernel(x_ref, masks_ref,
                     g1_ref, bt1_ref, w1_ref, b1_ref,
                     g2_ref, bt2_ref, w2_ref, b2_ref,
                     out_ref, col1_ref, col2_ref, *, skip, W):
    nhw = x_ref.shape[1]
    cp2 = g2_ref.shape[0]
    coutp = out_ref.shape[0]
    inv_n = 1.0 / nhw

    x = x_ref[...]              # (CP1, NHW) f32 (raw input, kept for skip)
    masks = masks_ref[...]      # (8, NHW) f32 0/1 — loaded once, reused twice

    # ---- norm1 + ELU + conv1 (single fused MXU matmul) ----------------------
    y1 = _bn_elu(x, g1_ref[...], bt1_ref[...], inv_n)
    col1 = _im2col(y1, col1_ref, masks, W, nhw)
    c1 = jnp.dot(w1_ref[...], col1,
                 preferred_element_type=jnp.float32) + b1_ref[...]
    if skip:                     # channel_in == channel_out: residual = input
        x_b = c1                 # w1 holds only the bottleneck slab
        res = x[:coutp, :]
    else:                        # fused weight slab: rows [0,cp2)=bottleneck,
        x_b = c1[:cp2, :]        # rows [cp2, cp2+coutp)=residual channels
        res = c1[cp2:, :]

    # ---- norm2 + ELU + conv2 + residual -------------------------------------
    y2 = _bn_elu(x_b, g2_ref[...], bt2_ref[...], inv_n)
    col2 = _im2col(y2, col2_ref, masks, W, nhw)
    out = jnp.dot(w2_ref[...], col2,
                  preferred_element_type=jnp.float32) + b2_ref[...] + res
    out_ref[...] = out.astype(out_ref.dtype)   # (CoutP, NHW): lane-dense store


def _round_up(c, m):
    return ((c + m - 1) // m) * m


def _pack_conv_weight(w_oihw, cin_pad):
    """OIHW (O, Cin, 3, 3) -> (O, 9*cin_pad) matching the im2col row order."""
    ci = w_oihw.shape[1]
    wp = jnp.pad(w_oihw, ((0, 0), (0, cin_pad - ci), (0, 0), (0, 0)))
    o = wp.shape[0]
    return jnp.transpose(wp, (0, 2, 3, 1)).reshape(o, 9 * cin_pad)


def _tap_masks(N, H, W):
    """(8, N*H*W) f32 0/1 halo masks for the 8 non-center 3x3 taps."""
    hh = jnp.tile(jnp.repeat(jnp.arange(H, dtype=jnp.int32), W), N)
    ww = jnp.tile(jnp.arange(W, dtype=jnp.int32), N * H)
    rows = []
    for dy in (-1, 0, 1):
        for dx in (-1, 0, 1):
            if dy == 0 and dx == 0:
                continue
            m = jnp.ones((N * H * W,), jnp.bool_)
            if dy == -1:
                m = m & (hh >= 1)
            elif dy == 1:
                m = m & (hh <= H - 2)
            if dx == -1:
                m = m & (ww >= 1)
            elif dx == 1:
                m = m & (ww <= W - 2)
            rows.append(m.astype(jnp.float32))
    return jnp.stack(rows, axis=0)


def resblock_forward(x_nchw, params, channel_in, channel_out):
    """Pallas ResBlock forward.  x: (N, Cin, H, W) f32 -> (N, Cout, H, W) f32."""
    N, Cin, H, W = x_nchw.shape
    assert Cin == channel_in
    Cb = channel_in // 2
    skip = (channel_in == channel_out)
    Cout = channel_out
    NHW = N * H * W
    # conv-input channel pads are multiples of 16 -> bf16 tap-slab stores are
    # full (16,128)-tile stores; output channel pad is 8 (f32 sublane tile).
    CP1 = _round_up(Cin, 16)
    CP2 = _round_up(Cb, 16)
    CoutP = _round_up(Cout, 8)

    f32, bf16 = jnp.float32, jnp.bfloat16

    # NCHW -> (Cin, N*H*W) (lane-dense spatial axis), channels padded
    x2d = jnp.transpose(x_nchw.astype(f32), (1, 0, 2, 3)).reshape(Cin, NHW)
    x2d = jnp.pad(x2d, ((0, CP1 - Cin), (0, 0)))

    masks = _tap_masks(N, H, W)                     # (8, NHW) f32

    w1m = _pack_conv_weight(params["w1"], CP1)      # (C1, 9*CP1) f32
    w2m = _pack_conv_weight(params["w2"], CP2)      # (Cout, 9*CP2) f32

    # conv1 split at the weight level; bottleneck slab padded to CP2 rows so
    # its output feeds norm2/conv2 with exactly-zero, aligned pad channels.
    w1b = jnp.pad(w1m[:Cb], ((0, CP2 - Cb), (0, 0)))
    b1b = jnp.pad(params["b1"][:Cb], (0, CP2 - Cb))
    if skip:
        w1 = w1b.astype(bf16)                                   # (CP2, 9*CP1)
        b1 = b1b.reshape(-1, 1).astype(f32)
    else:
        # fuse bottleneck + residual slabs into ONE matmul operand
        w1r = jnp.pad(w1m[Cb:Cb + Cout], ((0, CoutP - Cout), (0, 0)))
        b1r = jnp.pad(params["b1"][Cb:Cb + Cout], (0, CoutP - Cout))
        w1 = jnp.concatenate([w1b, w1r], axis=0).astype(bf16)   # (CP2+CoutP, 9*CP1)
        b1 = jnp.concatenate([b1b, b1r]).reshape(-1, 1).astype(f32)
    w2 = jnp.pad(w2m, ((0, CoutP - Cout), (0, 0))).astype(bf16)  # (CoutP, 9*CP2)
    b2 = jnp.pad(params["b2"], (0, CoutP - Cout)).reshape(-1, 1).astype(f32)

    # per-channel BN params; zero gamma/beta on pad channels keep them zero
    g1 = jnp.pad(params["g1"], (0, CP1 - Cin)).reshape(CP1, 1).astype(f32)
    bt1 = jnp.pad(params["bt1"], (0, CP1 - Cin)).reshape(CP1, 1).astype(f32)
    g2 = jnp.pad(params["g2"], (0, CP2 - Cb)).reshape(CP2, 1).astype(f32)
    bt2 = jnp.pad(params["bt2"], (0, CP2 - Cb)).reshape(CP2, 1).astype(f32)

    kernel = functools.partial(_resblock_kernel, skip=skip, W=W)

    # VMEM budget derived from actual buffer sizes (bf16 col scratches),
    # with 2x headroom, clamped below v7x's 64 MiB physical VMEM.
    need = (CP1 * NHW * 4                      # x
            + 8 * NHW * 4                      # masks
            + CoutP * NHW * 4                  # out
            + w1.shape[0] * 9 * CP1 * 2        # w1 (bf16)
            + CoutP * 9 * CP2 * 2              # w2 (bf16)
            + 9 * CP1 * NHW * 2                # col1 scratch (bf16)
            + 9 * CP2 * NHW * 2                # col2 scratch (bf16)
            + (CP1 + CP2 + 2 * CoutP + w1.shape[0]) * 4 * 4)   # small params
    vmem_limit = int(min(max(2 * need + (4 << 20), 16 << 20), 60 << 20))

    out2d = pl.pallas_call(
        kernel,
        out_shape=jax.ShapeDtypeStruct((CoutP, NHW), f32),
        scratch_shapes=[
            pltpu.VMEM((9 * CP1, NHW), bf16),   # im2col buffer for conv1
            pltpu.VMEM((9 * CP2, NHW), bf16),   # im2col buffer for conv2
        ],
        compiler_params=pltpu.CompilerParams(vmem_limit_bytes=vmem_limit),
    )(x2d, masks, g1, bt1, w1, b1, g2, bt2, w2, b2)

    # (CoutP, N*H*W) -> drop pad rows, reshape back to NCHW
    return jnp.transpose(out2d[:Cout].reshape(Cout, N, H, W), (1, 0, 2, 3))


# --------------------------- pure-JAX f32 reference --------------------------
def resblock_ref(x, params, channel_in, channel_out):
    def bn(v, g, b):
        mean = v.mean(axis=(0, 2, 3), keepdims=True)
        var = ((v - mean) ** 2).mean(axis=(0, 2, 3), keepdims=True)
        return (v - mean) / jnp.sqrt(var + EPS) * g.reshape(1, -1, 1, 1) \
            + b.reshape(1, -1, 1, 1)

    def elu(v):
        return jnp.where(v > 0.0, v, jnp.exp(jnp.minimum(v, 0.0)) - 1.0)

    def conv(v, w, b):
        y = jax.lax.conv_general_dilated(
            v, w, window_strides=(1, 1), padding=((1, 1), (1, 1)),
            dimension_numbers=("NCHW", "OIHW", "NCHW"))
        return y + b.reshape(1, -1, 1, 1)

    cb = channel_in // 2
    skip = (channel_in == channel_out)
    h = elu(bn(x, params["g1"], params["bt1"]))
    x_cat = conv(h, params["w1"], params["b1"])
    hb = x_cat[:, :cb]
    res = x if skip else x_cat[:, cb:]
    h2 = elu(bn(hb, params["g2"], params["bt2"]))
    return conv(h2, params["w2"], params["b2"]) + res


def init_params(key, channel_in, channel_out):
    cb = channel_in // 2
    c1 = cb if channel_in == channel_out else cb + channel_out
    ks = jax.random.split(key, 8)
    return dict(
        g1=1.0 + 0.5 * jax.random.normal(ks[0], (channel_in,), jnp.float32),
        bt1=0.1 * jax.random.normal(ks[1], (channel_in,), jnp.float32),
        w1=0.2 * jax.random.normal(ks[2], (c1, channel_in, 3, 3), jnp.float32),
        b1=0.1 * jax.random.normal(ks[3], (c1,), jnp.float32),
        g2=1.0 + 0.5 * jax.random.normal(ks[4], (cb,), jnp.float32),
        bt2=0.1 * jax.random.normal(ks[5], (cb,), jnp.float32),
        w2=0.2 * jax.random.normal(ks[6], (channel_out, cb, 3, 3), jnp.float32),
        b2=0.1 * jax.random.normal(ks[7], (channel_out,), jnp.float32),
    )


if __name__ == "__main__":
    key = jax.random.PRNGKey(0)
    N, H, W = 2, 16, 16

    # test both branches: skip (cin == cout) and non-skip (cin != cout)
    for cin, cout in [(8, 8), (8, 4)]:
        kx, kp, key = jax.random.split(key, 3)
        x = jax.random.normal(kx, (N, cin, H, W), jnp.float32)
        params = init_params(kp, cin, cout)

        out = jax.block_until_ready(resblock_forward(x, params, cin, cout))
        ref = jax.block_until_ready(resblock_ref(x, params, cin, cout))

        assert out.shape == (N, cout, H, W), out.shape
        # tolerance accounts for bf16 MXU matmul operands (f32 accumulation);
        # any structural bug produces O(1) errors and still fails this check.
        assert jnp.allclose(out, ref, atol=5e-2, rtol=5e-2), (
            f"mismatch for cin={cin}, cout={cout}: "
            f"max abs err {jnp.max(jnp.abs(out - ref))}")

    print("KERNEL_OK")
</pallas_src>

<mosaic_0001>
module attributes {stable_mosaic.version = 11 : i64} {
  func.func @_resblock_kernel(%arg0: memref<16x512xf32, #tpu.memory_space<vmem>>, %arg1: memref<8x512xf32, #tpu.memory_space<vmem>>, %arg2: memref<16x1xf32, #tpu.memory_space<vmem>>, %arg3: memref<16x1xf32, #tpu.memory_space<vmem>>, %arg4: memref<16x144xbf16, #tpu.memory_space<vmem>>, %arg5: memref<16x1xf32, #tpu.memory_space<vmem>>, %arg6: memref<16x1xf32, #tpu.memory_space<vmem>>, %arg7: memref<16x1xf32, #tpu.memory_space<vmem>>, %arg8: memref<8x144xbf16, #tpu.memory_space<vmem>>, %arg9: memref<8x1xf32, #tpu.memory_space<vmem>>, %arg10: memref<8x512xf32, #tpu.memory_space<vmem>>, %arg11: memref<144x512xbf16, #tpu.memory_space<vmem>>, %arg12: memref<144x512xbf16, #tpu.memory_space<vmem>>) attributes {dimension_semantics = [], scalar_prefetch = 0 : i64, scratch_operands = 2 : i64, tpu.core_type = #tpu.core_type<tc>} {
    %c0 = arith.constant 0 : index
    %c0_0 = arith.constant 0 : index
    %0 = vector.load %arg0[%c0, %c0_0] : memref<16x512xf32, #tpu.memory_space<vmem>>, vector<16x512xf32>
    %c0_1 = arith.constant 0 : index
    %c0_2 = arith.constant 0 : index
    %1 = vector.load %arg1[%c0_1, %c0_2] : memref<8x512xf32, #tpu.memory_space<vmem>>, vector<8x512xf32>
    %c0_3 = arith.constant 0 : index
    %c0_4 = arith.constant 0 : index
    %2 = vector.load %arg2[%c0_3, %c0_4] : memref<16x1xf32, #tpu.memory_space<vmem>>, vector<16x1xf32>
    %c0_5 = arith.constant 0 : index
    %c0_6 = arith.constant 0 : index
    %3 = vector.load %arg3[%c0_5, %c0_6] : memref<16x1xf32, #tpu.memory_space<vmem>>, vector<16x1xf32>
    %cst = arith.constant dense<0.000000e+00> : vector<16xf32>
    %4 = vector.multi_reduction <add>, %0, %cst [1] : vector<16x512xf32> to vector<16xf32>
    %5 = vector.shape_cast %4 : vector<16xf32> to vector<16x1xf32>
    %cst_7 = arith.constant 0.001953125 : f32
    %6 = vector.broadcast %cst_7 : f32 to vector<16x1xf32>
    %7 = arith.mulf %5, %6 : vector<16x1xf32>
    %8 = vector.broadcast %7 : vector<16x1xf32> to vector<16x512xf32>
    %9 = arith.subf %0, %8 : vector<16x512xf32>
    %10 = arith.mulf %9, %9 : vector<16x512xf32>
    %cst_8 = arith.constant dense<0.000000e+00> : vector<16xf32>
    %11 = vector.multi_reduction <add>, %10, %cst_8 [1] : vector<16x512xf32> to vector<16xf32>
    %12 = vector.shape_cast %11 : vector<16xf32> to vector<16x1xf32>
    %cst_9 = arith.constant 0.001953125 : f32
    %13 = vector.broadcast %cst_9 : f32 to vector<16x1xf32>
    %14 = arith.mulf %12, %13 : vector<16x1xf32>
    %cst_10 = arith.constant 9.99999974E-5 : f32
    %15 = vector.broadcast %cst_10 : f32 to vector<16x1xf32>
    %16 = arith.addf %14, %15 : vector<16x1xf32>
    %17 = math.rsqrt %16 : vector<16x1xf32>
    %18 = arith.mulf %2, %17 : vector<16x1xf32>
    %19 = vector.broadcast %18 : vector<16x1xf32> to vector<16x512xf32>
    %20 = arith.mulf %9, %19 : vector<16x512xf32>
    %21 = vector.broadcast %3 : vector<16x1xf32> to vector<16x512xf32>
    %22 = arith.addf %20, %21 : vector<16x512xf32>
    %cst_11 = arith.constant 0.000000e+00 : f32
    %23 = vector.broadcast %cst_11 : f32 to vector<16x512xf32>
    %24 = arith.cmpf ogt, %22, %23 : vector<16x512xf32>
    %cst_12 = arith.constant 0.000000e+00 : f32
    %25 = vector.broadcast %cst_12 : f32 to vector<16x512xf32>
    %26 = arith.minimumf %22, %25 : vector<16x512xf32>
    %27 = math.exp %26 : vector<16x512xf32>
    %cst_13 = arith.constant 1.000000e+00 : f32
    %28 = vector.broadcast %cst_13 : f32 to vector<16x512xf32>
    %29 = arith.subf %27, %28 : vector<16x512xf32>
    %30 = arith.select %24, %22, %29 : vector<16x512xi1>, vector<16x512xf32>
    %c17_i32 = arith.constant 17 : i32
    %31 = tpu.dynamic_rotate %30 by %c17_i32 dim 1 : vector<16x512xf32>, i32 -> vector<16x512xf32>
    %32 = vector.extract_strided_slice %1 {offsets = [0, 0], sizes = [1, 512], strides = [1, 1]} : vector<8x512xf32> to vector<1x512xf32>
    %33 = vector.broadcast %32 : vector<1x512xf32> to vector<16x512xf32>
    %34 = arith.mulf %31, %33 : vector<16x512xf32>
    %35 = arith.truncf %34 : vector<16x512xf32> to vector<16x512xbf16>
    %c0_14 = arith.constant 0 : index
    %c0_15 = arith.constant 0 : index
    %36 = vector.load %arg11[%c0_14, %c0_15] : memref<144x512xbf16, #tpu.memory_space<vmem>>, vector<16x512xbf16>
    tpu.vector_store %arg11[%c0_14, %c0_15], %35 {strides = array<i32>} : memref<144x512xbf16, #tpu.memory_space<vmem>>, vector<16x512xbf16>,
    %c16_i32 = arith.constant 16 : i32
    %37 = tpu.dynamic_rotate %30 by %c16_i32 dim 1 : vector<16x512xf32>, i32 -> vector<16x512xf32>
    %38 = vector.extract_strided_slice %1 {offsets = [1, 0], sizes = [1, 512], strides = [1, 1]} : vector<8x512xf32> to vector<1x512xf32>
    %39 = vector.broadcast %38 : vector<1x512xf32> to vector<16x512xf32>
    %40 = arith.mulf %37, %39 : vector<16x512xf32>
    %41 = arith.truncf %40 : vector<16x512xf32> to vector<16x512xbf16>
    %c16 = arith.constant 16 : index
    %c0_16 = arith.constant 0 : index
    %42 = vector.load %arg11[%c16, %c0_16] : memref<144x512xbf16, #tpu.memory_space<vmem>>, vector<16x512xbf16>
    tpu.vector_store %arg11[%c16, %c0_16], %41 {strides = array<i32>} : memref<144x512xbf16, #tpu.memory_space<vmem>>, vector<16x512xbf16>,
    %c15_i32 = arith.constant 15 : i32
    %43 = tpu.dynamic_rotate %30 by %c15_i32 dim 1 : vector<16x512xf32>, i32 -> vector<16x512xf32>
    %44 = vector.extract_strided_slice %1 {offsets = [2, 0], sizes = [1, 512], strides = [1, 1]} : vector<8x512xf32> to vector<1x512xf32>
    %45 = vector.broadcast %44 : vector<1x512xf32> to vector<16x512xf32>
    %46 = arith.mulf %43, %45 : vector<16x512xf32>
    %47 = arith.truncf %46 : vector<16x512xf32> to vector<16x512xbf16>
    %c32 = arith.constant 32 : index
    %c0_17 = arith.constant 0 : index
    %48 = vector.load %arg11[%c32, %c0_17] : memref<144x512xbf16, #tpu.memory_space<vmem>>, vector<16x512xbf16>
    tpu.vector_store %arg11[%c32, %c0_17], %47 {strides = array<i32>} : memref<144x512xbf16, #tpu.memory_space<vmem>>, vector<16x512xbf16>,
    %c1_i32 = arith.constant 1 : i32
    %49 = tpu.dynamic_rotate %30 by %c1_i32 dim 1 : vector<16x512xf32>, i32 -> vector<16x512xf32>
    %50 = vector.extract_strided_slice %1 {offsets = [3, 0], sizes = [1, 512], strides = [1, 1]} : vector<8x512xf32> to vector<1x512xf32>
    %51 = vector.broadcast %50 : vector<1x512xf32> to vector<16x512xf32>
    %52 = arith.mulf %49, %51 : vector<16x512xf32>
    %53 = arith.truncf %52 : vector<16x512xf32> to vector<16x512xbf16>
    %c48 = arith.constant 48 : index
    %c0_18 = arith.constant 0 : index
    %54 = vector.load %arg11[%c48, %c0_18] : memref<144x512xbf16, #tpu.memory_space<vmem>>, vector<16x512xbf16>
    tpu.vector_store %arg11[%c48, %c0_18], %53 {strides = array<i32>} : memref<144x512xbf16, #tpu.memory_space<vmem>>, vector<16x512xbf16>,
    %55 = arith.truncf %30 : vector<16x512xf32> to vector<16x512xbf16>
    %c64 = arith.constant 64 : index
    %c0_19 = arith.constant 0 : index
    %56 = vector.load %arg11[%c64, %c0_19] : memref<144x512xbf16, #tpu.memory_space<vmem>>, vector<16x512xbf16>
    tpu.vector_store %arg11[%c64, %c0_19], %55 {strides = array<i32>} : memref<144x512xbf16, #tpu.memory_space<vmem>>, vector<16x512xbf16>,
    %c511_i32 = arith.constant 511 : i32
    %57 = tpu.dynamic_rotate %30 by %c511_i32 dim 1 : vector<16x512xf32>, i32 -> vector<16x512xf32>
    %58 = vector.extract_strided_slice %1 {offsets = [4, 0], sizes = [1, 512], strides = [1, 1]} : vector<8x512xf32> to vector<1x512xf32>
    %59 = vector.broadcast %58 : vector<1x512xf32> to vector<16x512xf32>
    %60 = arith.mulf %57, %59 : vector<16x512xf32>
    %61 = arith.truncf %60 : vector<16x512xf32> to vector<16x512xbf16>
    %c80 = arith.constant 80 : index
    %c0_20 = arith.constant 0 : index
    %62 = vector.load %arg11[%c80, %c0_20] : memref<144x512xbf16, #tpu.memory_space<vmem>>, vector<16x512xbf16>
    tpu.vector_store %arg11[%c80, %c0_20], %61 {strides = array<i32>} : memref<144x512xbf16, #tpu.memory_space<vmem>>, vector<16x512xbf16>,
    %c497_i32 = arith.constant 497 : i32
    %63 = tpu.dynamic_rotate %30 by %c497_i32 dim 1 : vector<16x512xf32>, i32 -> vector<16x512xf32>
    %64 = vector.extract_strided_slice %1 {offsets = [5, 0], sizes = [1, 512], strides = [1, 1]} : vector<8x512xf32> to vector<1x512xf32>
    %65 = vector.broadcast %64 : vector<1x512xf32> to vector<16x512xf32>
    %66 = arith.mulf %63, %65 : vector<16x512xf32>
    %67 = arith.truncf %66 : vector<16x512xf32> to vector<16x512xbf16>
    %c96 = arith.constant 96 : index
    %c0_21 = arith.constant 0 : index
    %68 = vector.load %arg11[%c96, %c0_21] : memref<144x512xbf16, #tpu.memory_space<vmem>>, vector<16x512xbf16>
    tpu.vector_store %arg11[%c96, %c0_21], %67 {strides = array<i32>} : memref<144x512xbf16, #tpu.memory_space<vmem>>, vector<16x512xbf16>,
    %c496_i32 = arith.constant 496 : i32
    %69 = tpu.dynamic_rotate %30 by %c496_i32 dim 1 : vector<16x512xf32>, i32 -> vector<16x512xf32>
    %70 = vector.extract_strided_slice %1 {offsets = [6, 0], sizes = [1, 512], strides = [1, 1]} : vector<8x512xf32> to vector<1x512xf32>
    %71 = vector.broadcast %70 : vector<1x512xf32> to vector<16x512xf32>
    %72 = arith.mulf %69, %71 : vector<16x512xf32>
    %73 = arith.truncf %72 : vector<16x512xf32> to vector<16x512xbf16>
    %c112 = arith.constant 112 : index
    %c0_22 = arith.constant 0 : index
    %74 = vector.load %arg11[%c112, %c0_22] : memref<144x512xbf16, #tpu.memory_space<vmem>>, vector<16x512xbf16>
    tpu.vector_store %arg11[%c112, %c0_22], %73 {strides = array<i32>} : memref<144x512xbf16, #tpu.memory_space<vmem>>, vector<16x512xbf16>,
    %c495_i32 = arith.constant 495 : i32
    %75 = tpu.dynamic_rotate %30 by %c495_i32 dim 1 : vector<16x512xf32>, i32 -> vector<16x512xf32>
    %76 = vector.extract_strided_slice %1 {offsets = [7, 0], sizes = [1, 512], strides = [1, 1]} : vector<8x512xf32> to vector<1x512xf32>
    %77 = vector.broadcast %76 : vector<1x512xf32> to vector<16x512xf32>
    %78 = arith.mulf %75, %77 : vector<16x512xf32>
    %79 = arith.truncf %78 : vector<16x512xf32> to vector<16x512xbf16>
    %c128 = arith.constant 128 : index
    %c0_23 = arith.constant 0 : index
    %80 = vector.load %arg11[%c128, %c0_23] : memref<144x512xbf16, #tpu.memory_space<vmem>>, vector<16x512xbf16>
    tpu.vector_store %arg11[%c128, %c0_23], %79 {strides = array<i32>} : memref<144x512xbf16, #tpu.memory_space<vmem>>, vector<16x512xbf16>,
    %c0_24 = arith.constant 0 : index
    %c0_25 = arith.constant 0 : index
    %81 = vector.load %arg11[%c0_24, %c0_25] : memref<144x512xbf16, #tpu.memory_space<vmem>>, vector<144x512xbf16>
    %c0_26 = arith.constant 0 : index
    %c0_27 = arith.constant 0 : index
    %82 = vector.load %arg4[%c0_26, %c0_27] : memref<16x144xbf16, #tpu.memory_space<vmem>>, vector<16x144xbf16>
    %cst_28 = arith.constant dense<0.000000e+00> : vector<16x512xf32>
    %83 = tpu.matmul %82, %81, %cst_28 {dimension_numbers = #tpu.dot_dimension_numbers<[1], [0], [0], [1], [0, 0, 1, 1], [], []>} : vector<16x144xbf16>, vector<144x512xbf16>, vector<16x512xf32> -> vector<16x512xf32>
    %c0_29 = arith.constant 0 : index
    %c0_30 = arith.constant 0 : index
    %84 = vector.load %arg5[%c0_29, %c0_30] : memref<16x1xf32, #tpu.memory_space<vmem>>, vector<16x1xf32>
    %85 = vector.broadcast %84 : vector<16x1xf32> to vector<16x512xf32>
    %86 = arith.addf %83, %85 : vector<16x512xf32>
    %87 = vector.extract_strided_slice %0 {offsets = [0, 0], sizes = [8, 512], strides = [1, 1]} : vector<16x512xf32> to vector<8x512xf32>
    %c0_31 = arith.constant 0 : index
    %c0_32 = arith.constant 0 : index
    %88 = vector.load %arg6[%c0_31, %c0_32] : memref<16x1xf32, #tpu.memory_space<vmem>>, vector<16x1xf32>
    %c0_33 = arith.constant 0 : index
    %c0_34 = arith.constant 0 : index
    %89 = vector.load %arg7[%c0_33, %c0_34] : memref<16x1xf32, #tpu.memory_space<vmem>>, vector<16x1xf32>
    %cst_35 = arith.constant dense<0.000000e+00> : vector<16xf32>
    %90 = vector.multi_reduction <add>, %86, %cst_35 [1] : vector<16x512xf32> to vector<16xf32>
    %91 = vector.shape_cast %90 : vector<16xf32> to vector<16x1xf32>
    %cst_36 = arith.constant 0.001953125 : f32
    %92 = vector.broadcast %cst_36 : f32 to vector<16x1xf32>
    %93 = arith.mulf %91, %92 : vector<16x1xf32>
    %94 = vector.broadcast %93 : vector<16x1xf32> to vector<16x512xf32>
    %95 = arith.subf %86, %94 : vector<16x512xf32>
    %96 = arith.mulf %95, %95 : vector<16x512xf32>
    %cst_37 = arith.constant dense<0.000000e+00> : vector<16xf32>
    %97 = vector.multi_reduction <add>, %96, %cst_37 [1] : vector<16x512xf32> to vector<16xf32>
    %98 = vector.shape_cast %97 : vector<16xf32> to vector<16x1xf32>
    %cst_38 = arith.constant 0.001953125 : f32
    %99 = vector.broadcast %cst_38 : f32 to vector<16x1xf32>
    %100 = arith.mulf %98, %99 : vector<16x1xf32>
    %cst_39 = arith.constant 9.99999974E-5 : f32
    %101 = vector.broadcast %cst_39 : f32 to vector<16x1xf32>
    %102 = arith.addf %100, %101 : vector<16x1xf32>
    %103 = math.rsqrt %102 : vector<16x1xf32>
    %104 = arith.mulf %88, %103 : vector<16x1xf32>
    %105 = vector.broadcast %104 : vector<16x1xf32> to vector<16x512xf32>
    %106 = arith.mulf %95, %105 : vector<16x512xf32>
    %107 = vector.broadcast %89 : vector<16x1xf32> to vector<16x512xf32>
    %108 = arith.addf %106, %107 : vector<16x512xf32>
    %cst_40 = arith.constant 0.000000e+00 : f32
    %109 = vector.broadcast %cst_40 : f32 to vector<16x512xf32>
    %110 = arith.cmpf ogt, %108, %109 : vector<16x512xf32>
    %cst_41 = arith.constant 0.000000e+00 : f32
    %111 = vector.broadcast %cst_41 : f32 to vector<16x512xf32>
    %112 = arith.minimumf %108, %111 : vector<16x512xf32>
    %113 = math.exp %112 : vector<16x512xf32>
    %cst_42 = arith.constant 1.000000e+00 : f32
    %114 = vector.broadcast %cst_42 : f32 to vector<16x512xf32>
    %115 = arith.subf %113, %114 : vector<16x512xf32>
    %116 = arith.select %110, %108, %115 : vector<16x512xi1>, vector<16x512xf32>
    %c17_i32_43 = arith.constant 17 : i32
    %117 = tpu.dynamic_rotate %116 by %c17_i32_43 dim 1 : vector<16x512xf32>, i32 -> vector<16x512xf32>
    %118 = vector.extract_strided_slice %1 {offsets = [0, 0], sizes = [1, 512], strides = [1, 1]} : vector<8x512xf32> to vector<1x512xf32>
    %119 = vector.broadcast %118 : vector<1x512xf32> to vector<16x512xf32>
    %120 = arith.mulf %117, %119 : vector<16x512xf32>
    %121 = arith.truncf %120 : vector<16x512xf32> to vector<16x512xbf16>
    %c0_44 = arith.constant 0 : index
    %c0_45 = arith.constant 0 : index
    %122 = vector.load %arg12[%c0_44, %c0_45] : memref<144x512xbf16, #tpu.memory_space<vmem>>, vector<16x512xbf16>
    tpu.vector_store %arg12[%c0_44, %c0_45], %121 {strides = array<i32>} : memref<144x512xbf16, #tpu.memory_space<vmem>>, vector<16x512xbf16>,
    %c16_i32_46 = arith.constant 16 : i32
    %123 = tpu.dynamic_rotate %116 by %c16_i32_46 dim 1 : vector<16x512xf32>, i32 -> vector<16x512xf32>
    %124 = vector.extract_strided_slice %1 {offsets = [1, 0], sizes = [1, 512], strides = [1, 1]} : vector<8x512xf32> to vector<1x512xf32>
    %125 = vector.broadcast %124 : vector<1x512xf32> to vector<16x512xf32>
    %126 = arith.mulf %123, %125 : vector<16x512xf32>
    %127 = arith.truncf %126 : vector<16x512xf32> to vector<16x512xbf16>
    %c16_47 = arith.constant 16 : index
    %c0_48 = arith.constant 0 : index
    %128 = vector.load %arg12[%c16_47, %c0_48] : memref<144x512xbf16, #tpu.memory_space<vmem>>, vector<16x512xbf16>
    tpu.vector_store %arg12[%c16_47, %c0_48], %127 {strides = array<i32>} : memref<144x512xbf16, #tpu.memory_space<vmem>>, vector<16x512xbf16>,
    %c15_i32_49 = arith.constant 15 : i32
    %129 = tpu.dynamic_rotate %116 by %c15_i32_49 dim 1 : vector<16x512xf32>, i32 -> vector<16x512xf32>
    %130 = vector.extract_strided_slice %1 {offsets = [2, 0], sizes = [1, 512], strides = [1, 1]} : vector<8x512xf32> to vector<1x512xf32>
    %131 = vector.broadcast %130 : vector<1x512xf32> to vector<16x512xf32>
    %132 = arith.mulf %129, %131 : vector<16x512xf32>
    %133 = arith.truncf %132 : vector<16x512xf32> to vector<16x512xbf16>
    %c32_50 = arith.constant 32 : index
    %c0_51 = arith.constant 0 : index
    %134 = vector.load %arg12[%c32_50, %c0_51] : memref<144x512xbf16, #tpu.memory_space<vmem>>, vector<16x512xbf16>
    tpu.vector_store %arg12[%c32_50, %c0_51], %133 {strides = array<i32>} : memref<144x512xbf16, #tpu.memory_space<vmem>>, vector<16x512xbf16>,
    %c1_i32_52 = arith.constant 1 : i32
    %135 = tpu.dynamic_rotate %116 by %c1_i32_52 dim 1 : vector<16x512xf32>, i32 -> vector<16x512xf32>
    %136 = vector.extract_strided_slice %1 {offsets = [3, 0], sizes = [1, 512], strides = [1, 1]} : vector<8x512xf32> to vector<1x512xf32>
    %137 = vector.broadcast %136 : vector<1x512xf32> to vector<16x512xf32>
    %138 = arith.mulf %135, %137 : vector<16x512xf32>
    %139 = arith.truncf %138 : vector<16x512xf32> to vector<16x512xbf16>
    %c48_53 = arith.constant 48 : index
    %c0_54 = arith.constant 0 : index
    %140 = vector.load %arg12[%c48_53, %c0_54] : memref<144x512xbf16, #tpu.memory_space<vmem>>, vector<16x512xbf16>
    tpu.vector_store %arg12[%c48_53, %c0_54], %139 {strides = array<i32>} : memref<144x512xbf16, #tpu.memory_space<vmem>>, vector<16x512xbf16>,
    %141 = arith.truncf %116 : vector<16x512xf32> to vector<16x512xbf16>
    %c64_55 = arith.constant 64 : index
    %c0_56 = arith.constant 0 : index
    %142 = vector.load %arg12[%c64_55, %c0_56] : memref<144x512xbf16, #tpu.memory_space<vmem>>, vector<16x512xbf16>
    tpu.vector_store %arg12[%c64_55, %c0_56], %141 {strides = array<i32>} : memref<144x512xbf16, #tpu.memory_space<vmem>>, vector<16x512xbf16>,
    %c511_i32_57 = arith.constant 511 : i32
    %143 = tpu.dynamic_rotate %116 by %c511_i32_57 dim 1 : vector<16x512xf32>, i32 -> vector<16x512xf32>
    %144 = vector.extract_strided_slice %1 {offsets = [4, 0], sizes = [1, 512], strides = [1, 1]} : vector<8x512xf32> to vector<1x512xf32>
    %145 = vector.broadcast %144 : vector<1x512xf32> to vector<16x512xf32>
    %146 = arith.mulf %143, %145 : vector<16x512xf32>
    %147 = arith.truncf %146 : vector<16x512xf32> to vector<16x512xbf16>
    %c80_58 = arith.constant 80 : index
    %c0_59 = arith.constant 0 : index
    %148 = vector.load %arg12[%c80_58, %c0_59] : memref<144x512xbf16, #tpu.memory_space<vmem>>, vector<16x512xbf16>
    tpu.vector_store %arg12[%c80_58, %c0_59], %147 {strides = array<i32>} : memref<144x512xbf16, #tpu.memory_space<vmem>>, vector<16x512xbf16>,
    %c497_i32_60 = arith.constant 497 : i32
    %149 = tpu.dynamic_rotate %116 by %c497_i32_60 dim 1 : vector<16x512xf32>, i32 -> vector<16x512xf32>
    %150 = vector.extract_strided_slice %1 {offsets = [5, 0], sizes = [1, 512], strides = [1, 1]} : vector<8x512xf32> to vector<1x512xf32>
    %151 = vector.broadcast %150 : vector<1x512xf32> to vector<16x512xf32>
    %152 = arith.mulf %149, %151 : vector<16x512xf32>
    %153 = arith.truncf %152 : vector<16x512xf32> to vector<16x512xbf16>
    %c96_61 = arith.constant 96 : index
    %c0_62 = arith.constant 0 : index
    %154 = vector.load %arg12[%c96_61, %c0_62] : memref<144x512xbf16, #tpu.memory_space<vmem>>, vector<16x512xbf16>
    tpu.vector_store %arg12[%c96_61, %c0_62], %153 {strides = array<i32>} : memref<144x512xbf16, #tpu.memory_space<vmem>>, vector<16x512xbf16>,
    %c496_i32_63 = arith.constant 496 : i32
    %155 = tpu.dynamic_rotate %116 by %c496_i32_63 dim 1 : vector<16x512xf32>, i32 -> vector<16x512xf32>
    %156 = vector.extract_strided_slice %1 {offsets = [6, 0], sizes = [1, 512], strides = [1, 1]} : vector<8x512xf32> to vector<1x512xf32>
    %157 = vector.broadcast %156 : vector<1x512xf32> to vector<16x512xf32>
    %158 = arith.mulf %155, %157 : vector<16x512xf32>
    %159 = arith.truncf %158 : vector<16x512xf32> to vector<16x512xbf16>
    %c112_64 = arith.constant 112 : index
    %c0_65 = arith.constant 0 : index
    %160 = vector.load %arg12[%c112_64, %c0_65] : memref<144x512xbf16, #tpu.memory_space<vmem>>, vector<16x512xbf16>
    tpu.vector_store %arg12[%c112_64, %c0_65], %159 {strides = array<i32>} : memref<144x512xbf16, #tpu.memory_space<vmem>>, vector<16x512xbf16>,
    %c495_i32_66 = arith.constant 495 : i32
    %161 = tpu.dynamic_rotate %116 by %c495_i32_66 dim 1 : vector<16x512xf32>, i32 -> vector<16x512xf32>
    %162 = vector.extract_strided_slice %1 {offsets = [7, 0], sizes = [1, 512], strides = [1, 1]} : vector<8x512xf32> to vector<1x512xf32>
    %163 = vector.broadcast %162 : vector<1x512xf32> to vector<16x512xf32>
    %164 = arith.mulf %161, %163 : vector<16x512xf32>
    %165 = arith.truncf %164 : vector<16x512xf32> to vector<16x512xbf16>
    %c128_67 = arith.constant 128 : index
    %c0_68 = arith.constant 0 : index
    %166 = vector.load %arg12[%c128_67, %c0_68] : memref<144x512xbf16, #tpu.memory_space<vmem>>, vector<16x512xbf16>
    tpu.vector_store %arg12[%c128_67, %c0_68], %165 {strides = array<i32>} : memref<144x512xbf16, #tpu.memory_space<vmem>>, vector<16x512xbf16>,
    %c0_69 = arith.constant 0 : index
    %c0_70 = arith.constant 0 : index
    %167 = vector.load %arg12[%c0_69, %c0_70] : memref<144x512xbf16, #tpu.memory_space<vmem>>, vector<144x512xbf16>
    %c0_71 = arith.constant 0 : index
    %c0_72 = arith.constant 0 : index
    %168 = vector.load %arg8[%c0_71, %c0_72] : memref<8x144xbf16, #tpu.memory_space<vmem>>, vector<8x144xbf16>
    %cst_73 = arith.constant dense<0.000000e+00> : vector<8x512xf32>
    %169 = tpu.matmul %168, %167, %cst_73 {dimension_numbers = #tpu.dot_dimension_numbers<[1], [0], [0], [1], [0, 0, 1, 1], [], []>} : vector<8x144xbf16>, vector<144x512xbf16>, vector<8x512xf32> -> vector<8x512xf32>
    %c0_74 = arith.constant 0 : index
    %c0_75 = arith.constant 0 : index
    %170 = vector.load %arg9[%c0_74, %c0_75] : memref<8x1xf32, #tpu.memory_space<vmem>>, vector<8x1xf32>
    %171 = vector.broadcast %170 : vector<8x1xf32> to vector<8x512xf32>
    %172 = arith.addf %169, %171 : vector<8x512xf32>
    %173 = arith.addf %172, %87 : vector<8x512xf32>
    %c0_76 = arith.constant 0 : index
    %c0_77 = arith.constant 0 : index
    %174 = vector.load %arg10[%c0_76, %c0_77] : memref<8x512xf32, #tpu.memory_space<vmem>>, vector<8x512xf32>
    tpu.vector_store %arg10[%c0_76, %c0_77], %173 {strides = array<i32>} : memref<8x512xf32, #tpu.memory_space<vmem>>, vector<8x512xf32>,
    return
  }
}

</mosaic_0001>

<llo_original>
// kernel: tpu_custom_call.1
$region0: #{tpu_custom_call.1}
  #allocation0 [shape = 'u32[]', space=smem, size = 0x4, offset = 0x4, fixed_abs, tag = 'smem constant byte address 0x4 - core index']
  #allocation1 [shape = 'u32[144,128]{1,0:T(1,128)}', space=vmem, size = 0x12000, scoped, tag = 'internal scratch']
  #allocation2 [shape = 'bf16[144,512]{1,0:T(8,128)(2,1)}', space=vmem, size = 0x24000, scoped, tag = 'scratch operand']
  #allocation3 [shape = 'bf16[144,512]{1,0:T(8,128)(2,1)}', space=vmem, size = 0x24000, scoped, tag = 'scratch operand']
  %s0 = inlined_call_operand.vmem [shape: f32[16,512], index: 0, kind: input, shape index: {}]
  %s1 = inlined_call_operand.hbm [shape: f32[8,512], index: 1, kind: input, shape index: {}]
  %s2 = inlined_call_operand.vmem [shape: f32[16,1], index: 2, kind: input, shape index: {}]
  %s3 = inlined_call_operand.vmem [shape: f32[16,1], index: 3, kind: input, shape index: {}]
  %s4 = inlined_call_operand.vmem [shape: bf16[16,144], index: 4, kind: input, shape index: {}]
  %s5 = inlined_call_operand.vmem [shape: f32[16,1], index: 5, kind: input, shape index: {}]
  %s6 = inlined_call_operand.vmem [shape: f32[16,1], index: 6, kind: input, shape index: {}]
  %s7 = inlined_call_operand.vmem [shape: f32[16,1], index: 7, kind: input, shape index: {}]
  %s8 = inlined_call_operand.vmem [shape: bf16[8,144], index: 8, kind: input, shape index: {}]
  %s9 = inlined_call_operand.vmem [shape: f32[8,1], index: 9, kind: input, shape index: {}]
  %s10 = inlined_call_operand.hbm [shape: f32[8,512], index: 10, kind: output, shape index: {}]
  %s11 = sld [smem:[#allocation0]]
  $region54: #{tpu_custom_call.1} parent=0
    _
  %s13 = ssub.s32 1, %s11
  %s14 = scalar_select 0, %s13, %s11
  $region1: #{tpu_custom_call.1} parent=0
    #allocation4 [shape = 'u8[16384]{0}', space=vmem, size = 0x4000, scoped, tag = 'input window, operand 1, single buffered']
    #allocation5 [shape = 's32[1]{0}', space=sflag, size = 0x4, scoped, tag = 'scoped memory for tpu_custom_call.1']
    #allocation6 [shape = 's32[1]{0}', space=sflag, size = 0x4, scoped, tag = 'scoped memory for tpu_custom_call.1']
    #allocation7 [shape = 'u8[16384]{0}', space=vmem, size = 0x4000, scoped, tag = 'output window, operand 0, single buffered']
    %15 = vsyncpa [#allocation5], 0
    %16 = vsyncpa [#allocation6], 0
    // Predicated region
    $region2: #{tpu_custom_call.1} parent=1 // pred_check
      _
    $region3: #{tpu_custom_call.1} parent=1 // pred_check_branch
      %18 = sbr.rel (0) target = $region5
    $region4: #{tpu_custom_call.1} parent=1 // pred_region
      _
    $region5: #{tpu_custom_call.1} parent=1 // pred_fallthru
      _
    // Predicated region
    $region6: #{tpu_custom_call.1} parent=1 // pred_check
      _
    $region7: #{tpu_custom_call.1} parent=1 // pred_check_branch
      %20 = sbr.rel (0) target = $region9
    $region8: #{tpu_custom_call.1} parent=1 // pred_region
      %s22 = ssub.s32 512, 512
      %23 = vsyncadd [#allocation5], %s22
      %s25 = sshll.u32 [#allocation4], 4
      %s26 = int_to_ptr.vmem [resolvable:$true] %s25
      %28 = dma.hbm_to_vmem [thread:$0]  %s1, 512, %s26, [#allocation5]
    $region9: #{tpu_custom_call.1} parent=1 // pred_fallthru
      _
    // Predicated region
    $region10: #{tpu_custom_call.1} parent=1 // pred_check
      _
    $region11: #{tpu_custom_call.1} parent=1 // pred_check_branch
      %30 = sbr.rel (0) target = $region13
    $region12: #{tpu_custom_call.1} parent=1 // pred_region
      _
    $region13: #{tpu_custom_call.1} parent=1 // pred_fallthru
      _
    // Predicated region
    $region14: #{tpu_custom_call.1} parent=1 // pred_check
      _
    $region15: #{tpu_custom_call.1} parent=1 // pred_check_branch
      %32 = sbr.rel (0) target = $region17
    $region16: #{tpu_custom_call.1} parent=1 // pred_region
      _
    $region17: #{tpu_custom_call.1} parent=1 // pred_fallthru
      _
    // Predicated region
    $region18: #{tpu_custom_call.1} parent=1 // pred_check
      _
    $region19: #{tpu_custom_call.1} parent=1 // pred_check_branch
      %34 = sbr.rel (0) target = $region21
    $region20: #{tpu_custom_call.1} parent=1 // pred_region
      _
    $region21: #{tpu_custom_call.1} parent=1 // pred_fallthru
      _
    // Predicated region
    $region22: #{tpu_custom_call.1} parent=1 // pred_check
      _
    $region23: #{tpu_custom_call.1} parent=1 // pred_check_branch
      %36 = sbr.rel (0) target = $region25
    $region24: #{tpu_custom_call.1} parent=1 // pred_region
      _
    $region25: #{tpu_custom_call.1} parent=1 // pred_fallthru
      _
    // Predicated region
    $region26: #{tpu_custom_call.1} parent=1 // pred_check
      _
    $region27: #{tpu_custom_call.1} parent=1 // pred_check_branch
      %38 = sbr.rel (0) target = $region29
    $region28: #{tpu_custom_call.1} parent=1 // pred_region
      _
    $region29: #{tpu_custom_call.1} parent=1 // pred_fallthru
      _
    // Predicated region
    $region30: #{tpu_custom_call.1} parent=1 // pred_check
      _
    $region31: #{tpu_custom_call.1} parent=1 // pred_check_branch
      %40 = sbr.rel (0) target = $region33
    $region32: #{tpu_custom_call.1} parent=1 // pred_region
      _
    $region33: #{tpu_custom_call.1} parent=1 // pred_fallthru
      _
    // Predicated region
    $region34: #{tpu_custom_call.1} parent=1 // pred_check
      _
    $region35: #{tpu_custom_call.1} parent=1 // pred_check_branch
      %42 = sbr.rel (0) target = $region37
    $region36: #{tpu_custom_call.1} parent=1 // pred_region
      _
    $region37: #{tpu_custom_call.1} parent=1 // pred_fallthru
      _
    // Predicated region
    $region38: #{tpu_custom_call.1} parent=1 // pred_check
      _
    $region39: #{tpu_custom_call.1} parent=1 // pred_check_branch
      %44 = sbr.rel (0) target = $region41
    $region40: #{tpu_custom_call.1} parent=1 // pred_region
      _
    $region41: #{tpu_custom_call.1} parent=1 // pred_fallthru
      _
    // Predicated region
    $region42: #{tpu_custom_call.1} parent=1 // pred_check
      _
    $region43: #{tpu_custom_call.1} parent=1 // pred_check_branch
      %46 = sbr.rel (0) target = $region45
    $region44: #{tpu_custom_call.1} parent=1 // pred_region
      %47 = dma.done [#allocation5], 512
    $region45: #{tpu_custom_call.1} parent=1 // pred_fallthru
      _
    %v49 = vld [vmem:[%s0] sm:$0xff]
    %v50 = vld [vmem:[%s0 + $0x8] sm:$0xff]
    %v51 = vld [vmem:[%s0 + $0x10] sm:$0xff]
    %v52 = vld [vmem:[%s0 + $0x18] sm:$0xff]
    %v53 = vld [vmem:[%s0 + $0x20] sm:$0xff]
    %v54 = vld [vmem:[%s0 + $0x28] sm:$0xff]
    %v55 = vld [vmem:[%s0 + $0x30] sm:$0xff]
    %v56 = vld [vmem:[%s0 + $0x38] sm:$0xff]
    %v57 = vld [vmem:[#allocation4] sm:$0xff]
    %v58 = vld [vmem:[#allocation4 + $0x8] sm:$0xff]
    %v59 = vld [vmem:[#allocation4 + $0x10] sm:$0xff]
    %v60 = vld [vmem:[#allocation4 + $0x18] sm:$0xff]
    %v61 = vld [vmem:[%s2] sm:$0xff]
    %v62 = vld [vmem:[%s2 + $0x8] sm:$0xff]
    %v63 = vld [vmem:[%s3] sm:$0xff]
    %v64 = vld [vmem:[%s3 + $0x8] sm:$0xff]
    %v65 = vadd.f32 %v49, %v50
    %v66 = vadd.f32 %v65, %v51
    %v67 = vadd.f32 %v66, %v52
    %68 = vadd.xlane.f32.xlu0 %v67
    %v69 = vpop.xlane.xlu0 %68
    %v70 = vadd.f32 %v53, %v54
    %v71 = vadd.f32 %v70, %v55
    %v72 = vadd.f32 %v71, %v56
    %73 = vadd.xlane.f32.xlu0 %v72
    %v74 = vpop.xlane.xlu0 %73
    %v75 = vmul.f32 %v69, 0.001953125
    %v76 = vmul.f32 %v74, 0.001953125
    %v77 = vsub.f32 %v49, %v75
    %v78 = vsub.f32 %v50, %v75
    %v79 = vsub.f32 %v51, %v75
    %v80 = vsub.f32 %v52, %v75
    %v81 = vsub.f32 %v53, %v76
    %v82 = vsub.f32 %v54, %v76
    %v83 = vsub.f32 %v55, %v76
    %v84 = vsub.f32 %v56, %v76
    %v85 = vmul.f32 %v77, %v77
    %v86 = vmul.f32 %v78, %v78
    %v87 = vmul.f32 %v79, %v79
    %v88 = vmul.f32 %v80, %v80
    %v89 = vmul.f32 %v81, %v81
    %v90 = vmul.f32 %v82, %v82
    %v91 = vmul.f32 %v83, %v83
    %v92 = vmul.f32 %v84, %v84
    %v93 = vadd.f32 %v85, %v86
    %v94 = vadd.f32 %v93, %v87
    %v95 = vadd.f32 %v94, %v88
    %96 = vadd.xlane.f32.xlu0 %v95
    %v97 = vpop.xlane.xlu0 %96
    %v98 = vadd.f32 %v89, %v90
    %v99 = vadd.f32 %v98, %v91
    %v100 = vadd.f32 %v99, %v92
    %101 = vadd.xlane.f32.xlu0 %v100
    %v102 = vpop.xlane.xlu0 %101
    %v103 = vmul.f32 %v97, 0.001953125
    %v104 = vmul.f32 %v102, 0.001953125
    %v105 = vadd.f32 %v103, 0.0001
    %v106 = vadd.f32 %v104, 0.0001
    %v107 = vrsqrt.pop %v105
    %v108 = vrsqrt.pop %v106
    %v109 = vmul.f32 %v61, %v107
    %v110 = vmul.f32 %v62, %v108
    %112 = vset.pattern.permute.xlu0 0
    %113 = vperm.xlu0 %112, %v109
    %v114 = vpop.permute.xlu0 %113
    %117 = vset.pattern.permute.xlu0 0
    %118 = vperm.xlu0 %117, %v110
    %v119 = vpop.permute.xlu0 %118
    %v121 = vmul.f32 %v77, %v114
    %v122 = vmul.f32 %v78, %v114
    %v123 = vmul.f32 %v79, %v114
    %v124 = vmul.f32 %v80, %v114
    %v125 = vmul.f32 %v81, %v119
    %v126 = vmul.f32 %v82, %v119
    %v127 = vmul.f32 %v83, %v119
    %v128 = vmul.f32 %v84, %v119
    %130 = vset.pattern.permute.xlu0 0
    %131 = vperm.xlu0 %130, %v63
    %v132 = vpop.permute.xlu0 %131
    %135 = vset.pattern.permute.xlu0 0
    %136 = vperm.xlu0 %135, %v64
    %v137 = vpop.permute.xlu0 %136
    %v139 = vadd.f32 %v121, %v132
    %v140 = vadd.f32 %v122, %v132
    %v141 = vadd.f32 %v123, %v132
    %v142 = vadd.f32 %v124, %v132
    %v143 = vadd.f32 %v125, %v137
    %v144 = vadd.f32 %v126, %v137
    %v145 = vadd.f32 %v127, %v137
    %v146 = vadd.f32 %v128, %v137
    %vm147 = vcmp.gt.f32.partialorder %v139, 0.0
    %vm148 = vcmp.gt.f32.partialorder %v140, 0.0
    %vm149 = vcmp.gt.f32.partialorder %v141, 0.0
    %vm150 = vcmp.gt.f32.partialorder %v142, 0.0
    %vm151 = vcmp.gt.f32.partialorder %v143, 0.0
    %vm152 = vcmp.gt.f32.partialorder %v144, 0.0
    %vm153 = vcmp.gt.f32.partialorder %v145, 0.0
    %vm154 = vcmp.gt.f32.partialorder %v146, 0.0
    %v155 = vmin.f32 %v139, 0.0
    %v156 = vmin.f32 %v140, 0.0
    %v157 = vmin.f32 %v141, 0.0
    %v158 = vmin.f32 %v142, 0.0
    %v159 = vmin.f32 %v143, 0.0
    %v160 = vmin.f32 %v144, 0.0
    %v161 = vmin.f32 %v145, 0.0
    %v162 = vmin.f32 %v146, 0.0
    %v163 = vmul.f32 %v155, 1.442695
    %v164 = vpow.pop %v163
    %v165 = vmul.f32 %v156, 1.442695
    %v166 = vpow.pop %v165
    %v167 = vmul.f32 %v157, 1.442695
    %v168 = vpow.pop %v167
    %v169 = vmul.f32 %v158, 1.442695
    %v170 = vpow.pop %v169
    %v171 = vmul.f32 %v159, 1.442695
    %v172 = vpow.pop %v171
    %v173 = vmul.f32 %v160, 1.442695
    %v174 = vpow.pop %v173
    %v175 = vmul.f32 %v161, 1.442695
    %v176 = vpow.pop %v175
    %v177 = vmul.f32 %v162, 1.442695
    %v178 = vpow.pop %v177
    %v179 = vsub.f32 %v164, 1.0
    %v180 = vsub.f32 %v166, 1.0
    %v181 = vsub.f32 %v168, 1.0
    %v182 = vsub.f32 %v170, 1.0
    %v183 = vsub.f32 %v172, 1.0
    %v184 = vsub.f32 %v174, 1.0
    %v185 = vsub.f32 %v176, 1.0
    %v186 = vsub.f32 %v178, 1.0
    %v187 = vsel %vm147, %v139, %v179
    %v188 = vsel %vm148, %v140, %v180
    %v189 = vsel %vm149, %v141, %v181
    %v190 = vsel %vm150, %v142, %v182
    %v191 = vsel %vm151, %v143, %v183
    %v192 = vsel %vm152, %v144, %v184
    %v193 = vsel %vm153, %v145, %v185
    %v194 = vsel %vm154, %v146, %v186
    %195 = vrot.lane.b32.xlu0 %v187, 17
    %v196 = vpop.permute.xlu0 %195
    %197 = vrot.lane.b32.xlu0 %v191, 17
    %v198 = vpop.permute.xlu0 %197
    %199 = vrot.lane.b32.xlu0 %v188, 17
    %v200 = vpop.permute.xlu0 %199
    %201 = vrot.lane.b32.xlu0 %v192, 17
    %v202 = vpop.permute.xlu0 %201
    %203 = vrot.lane.b32.xlu0 %v189, 17
    %v204 = vpop.permute.xlu0 %203
    %205 = vrot.lane.b32.xlu0 %v193, 17
    %v206 = vpop.permute.xlu0 %205
    %207 = vrot.lane.b32.xlu0 %v190, 17
    %v208 = vpop.permute.xlu0 %207
    %209 = vrot.lane.b32.xlu0 %v194, 17
    %v210 = vpop.permute.xlu0 %209
    %v211 = vlaneseq
    %v212 = vand.u32 %v211, 127
    %vm213 = vcmp.lt.s32.totalorder %v212, 17
    %v214 = vsel %vm213, %v204, %v208
    %v215 = vsel %vm213, %v206, %v210
    %v216 = vsel %vm213, %v200, %v204
    %v217 = vsel %vm213, %v202, %v206
    %v218 = vsel %vm213, %v196, %v200
    %v219 = vsel %vm213, %v198, %v202
    %v220 = vsel %vm213, %v208, %v196
    %v221 = vsel %vm213, %v210, %v198
    %v222 = vlaneseq
    %v223 = vshrl.u32 %v222, 7
    %v224 = vsub.s32 0, %v223
    %v225 = vrot.slane %v57, %v224
    %v226 = vlaneseq
    %v227 = vshrl.u32 %v226, 7
    %v228 = vsub.s32 0, %v227
    %v229 = vrot.slane %v58, %v228
    %v230 = vlaneseq
    %v231 = vshrl.u32 %v230, 7
    %v232 = vsub.s32 0, %v231
    %v233 = vrot.slane %v59, %v232
    %v234 = vlaneseq
    %v235 = vshrl.u32 %v234, 7
    %v236 = vsub.s32 0, %v235
    %v237 = vrot.slane %v60, %v236
    %v238 = vmul.f32 %v220, %v225
    %v239 = vmul.f32 %v218, %v229
    %v240 = vmul.f32 %v216, %v233
    %v241 = vmul.f32 %v214, %v237
    %v242 = vmul.f32 %v221, %v225
    %v243 = vmul.f32 %v219, %v229
    %v244 = vmul.f32 %v217, %v233
    %v245 = vmul.f32 %v215, %v237
    %v246 = vpack.c.bf16 %v242, %v238
    %v247 = vpack.c.bf16 %v243, %v239
    %v248 = vpack.c.bf16 %v244, %v240
    %v249 = vpack.c.bf16 %v245, %v241
    %v254 = vunpack.c.l.b16 %v246
    %v255 = vunpack.c.l.b16 %v247
    %v256 = vunpack.c.l.b16 %v248
    %v257 = vunpack.c.l.b16 %v249
    %v258 = vunpack.c.h.b16 %v246
    %v259 = vunpack.c.h.b16 %v247
    %v260 = vunpack.c.h.b16 %v248
    %v261 = vunpack.c.h.b16 %v249
    %v262 = vpack.c.b16 %v255, %v254
    %v263 = vpack.c.b16 %v257, %v256
    %v264 = vpack.c.b16 %v259, %v258
    %v265 = vpack.c.b16 %v261, %v260
    %270 = vst [vmem:[#allocation2] sm:$0xff] %v262
    %271 = vst [vmem:[#allocation2 + $0x8] sm:$0xff] %v263
    %272 = vst [vmem:[#allocation2 + $0x10] sm:$0xff] %v264
    %273 = vst [vmem:[#allocation2 + $0x18] sm:$0xff] %v265
    %274 = vrot.lane.b32.xlu0 %v187, 16
    %v275 = vpop.permute.xlu0 %274
    %276 = vrot.lane.b32.xlu0 %v191, 16
    %v277 = vpop.permute.xlu0 %276
    %278 = vrot.lane.b32.xlu0 %v188, 16
    %v279 = vpop.permute.xlu0 %278
    %280 = vrot.lane.b32.xlu0 %v192, 16
    %v281 = vpop.permute.xlu0 %280
    %282 = vrot.lane.b32.xlu0 %v189, 16
    %v283 = vpop.permute.xlu0 %282
    %284 = vrot.lane.b32.xlu0 %v193, 16
    %v285 = vpop.permute.xlu0 %284
    %286 = vrot.lane.b32.xlu0 %v190, 16
    %v287 = vpop.permute.xlu0 %286
    %288 = vrot.lane.b32.xlu0 %v194, 16
    %v289 = vpop.permute.xlu0 %288
    %vm290 = vcmp.lt.s32.totalorder %v212, 16
    %v291 = vsel %vm290, %v283, %v287
    %v292 = vsel %vm290, %v285, %v289
    %v293 = vsel %vm290, %v279, %v283
    %v294 = vsel %vm290, %v281, %v285
    %v295 = vsel %vm290, %v275, %v279
    %v296 = vsel %vm290, %v277, %v281
    %v297 = vsel %vm290, %v287, %v275
    %v298 = vsel %vm290, %v289, %v277
    %v299 = vlaneseq
    %v300 = vshrl.u32 %v299, 7
    %v301 = vsub.s32 1, %v300
    %v302 = vrot.slane %v57, %v301
    %v303 = vlaneseq
    %v304 = vshrl.u32 %v303, 7
    %v305 = vsub.s32 1, %v304
    %v306 = vrot.slane %v58, %v305
    %v307 = vlaneseq
    %v308 = vshrl.u32 %v307, 7
    %v309 = vsub.s32 1, %v308
    %v310 = vrot.slane %v59, %v309
    %v311 = vlaneseq
    %v312 = vshrl.u32 %v311, 7
    %v313 = vsub.s32 1, %v312
    %v314 = vrot.slane %v60, %v313
    %v315 = vmul.f32 %v297, %v302
    %v316 = vmul.f32 %v295, %v306
    %v317 = vmul.f32 %v293, %v310
    %v318 = vmul.f32 %v291, %v314
    %v319 = vmul.f32 %v298, %v302
    %v320 = vmul.f32 %v296, %v306
    %v321 = vmul.f32 %v294, %v310
    %v322 = vmul.f32 %v292, %v314
    %v323 = vpack.c.bf16 %v319, %v315
    %v324 = vpack.c.bf16 %v320, %v316
    %v325 = vpack.c.bf16 %v321, %v317
    %v326 = vpack.c.bf16 %v322, %v318
    %v331 = vunpack.c.l.b16 %v323
    %v332 = vunpack.c.l.b16 %v324
    %v333 = vunpack.c.l.b16 %v325
    %v334 = vunpack.c.l.b16 %v326
    %v335 = vunpack.c.h.b16 %v323
    %v336 = vunpack.c.h.b16 %v324
    %v337 = vunpack.c.h.b16 %v325
    %v338 = vunpack.c.h.b16 %v326
    %v339 = vpack.c.b16 %v332, %v331
    %v340 = vpack.c.b16 %v334, %v333
    %v341 = vpack.c.b16 %v336, %v335
    %v342 = vpack.c.b16 %v338, %v337
    %347 = vst [vmem:[#allocation2 + $0x20] sm:$0xff] %v339
    %348 = vst [vmem:[#allocation2 + $0x28] sm:$0xff] %v340
    %349 = vst [vmem:[#allocation2 + $0x30] sm:$0xff] %v341
    %350 = vst [vmem:[#allocation2 + $0x38] sm:$0xff] %v342
    %351 = vrot.lane.b32.xlu0 %v187, 15
    %v352 = vpop.permute.xlu0 %351
    %353 = vrot.lane.b32.xlu0 %v191, 15
    %v354 = vpop.permute.xlu0 %353
    %355 = vrot.lane.b32.xlu0 %v188, 15
    %v356 = vpop.permute.xlu0 %355
    %357 = vrot.lane.b32.xlu0 %v192, 15
    %v358 = vpop.permute.xlu0 %357
    %359 = vrot.lane.b32.xlu0 %v189, 15
    %v360 = vpop.permute.xlu0 %359
    %361 = vrot.lane.b32.xlu0 %v193, 15
    %v362 = vpop.permute.xlu0 %361
    %363 = vrot.lane.b32.xlu0 %v190, 15
    %v364 = vpop.permute.xlu0 %363
    %365 = vrot.lane.b32.xlu0 %v194, 15
    %v366 = vpop.permute.xlu0 %365
    %vm367 = vcmp.lt.s32.totalorder %v212, 15
    %v368 = vsel %vm367, %v360, %v364
    %v369 = vsel %vm367, %v362, %v366
    %v370 = vsel %vm367, %v356, %v360
    %v371 = vsel %vm367, %v358, %v362
    %v372 = vsel %vm367, %v352, %v356
    %v373 = vsel %vm367, %v354, %v358
    %v374 = vsel %vm367, %v364, %v352
    %v375 = vsel %vm367, %v366, %v354
    %v376 = vlaneseq
    %v377 = vshrl.u32 %v376, 7
    %v378 = vsub.s32 2, %v377
    %v379 = vrot.slane %v57, %v378
    %v380 = vlaneseq
    %v381 = vshrl.u32 %v380, 7
    %v382 = vsub.s32 2, %v381
    %v383 = vrot.slane %v58, %v382
    %v384 = vlaneseq
    %v385 = vshrl.u32 %v384, 7
    %v386 = vsub.s32 2, %v385
    %v387 = vrot.slane %v59, %v386
    %v388 = vlaneseq
    %v389 = vshrl.u32 %v388, 7
    %v390 = vsub.s32 2, %v389
    %v391 = vrot.slane %v60, %v390
    %v392 = vmul.f32 %v374, %v379
    %v393 = vmul.f32 %v372, %v383
    %v394 = vmul.f32 %v370, %v387
    %v395 = vmul.f32 %v368, %v391
    %v396 = vmul.f32 %v375, %v379
    %v397 = vmul.f32 %v373, %v383
    %v398 = vmul.f32 %v371, %v387
    %v399 = vmul.f32 %v369, %v391
    %v400 = vpack.c.bf16 %v396, %v392
    %v401 = vpack.c.bf16 %v397, %v393
    %v402 = vpack.c.bf16 %v398, %v394
    %v403 = vpack.c.bf16 %v399, %v395
    %v408 = vunpack.c.l.b16 %v400
    %v409 = vunpack.c.l.b16 %v401
    %v410 = vunpack.c.l.b16 %v402
    %v411 = vunpack.c.l.b16 %v403
    %v412 = vunpack.c.h.b16 %v400
    %v413 = vunpack.c.h.b16 %v401
    %v414 = vunpack.c.h.b16 %v402
    %v415 = vunpack.c.h.b16 %v403
    %v416 = vpack.c.b16 %v409, %v408
    %v417 = vpack.c.b16 %v411, %v410
    %v418 = vpack.c.b16 %v413, %v412
    %v419 = vpack.c.b16 %v415, %v414
    %424 = vst [vmem:[#allocation2 + $0x40] sm:$0xff] %v416
    %425 = vst [vmem:[#allocation2 + $0x48] sm:$0xff] %v417
    %426 = vst [vmem:[#allocation2 + $0x50] sm:$0xff] %v418
    %427 = vst [vmem:[#allocation2 + $0x58] sm:$0xff] %v419
    %428 = vrot.lane.b32.xlu0 %v187, 1
    %v429 = vpop.permute.xlu0 %428
    %430 = vrot.lane.b32.xlu0 %v191, 1
    %v431 = vpop.permute.xlu0 %430
    %432 = vrot.lane.b32.xlu0 %v188, 1
    %v433 = vpop.permute.xlu0 %432
    %434 = vrot.lane.b32.xlu0 %v192, 1
    %v435 = vpop.permute.xlu0 %434
    %436 = vrot.lane.b32.xlu0 %v189, 1
    %v437 = vpop.permute.xlu0 %436
    %438 = vrot.lane.b32.xlu0 %v193, 1
    %v439 = vpop.permute.xlu0 %438
    %440 = vrot.lane.b32.xlu0 %v190, 1
    %v441 = vpop.permute.xlu0 %440
    %442 = vrot.lane.b32.xlu0 %v194, 1
    %v443 = vpop.permute.xlu0 %442
    %vm444 = vcmp.lt.s32.totalorder %v212, 1
    %v445 = vsel %vm444, %v437, %v441
    %v446 = vsel %vm444, %v439, %v443
    %v447 = vsel %vm444, %v433, %v437
    %v448 = vsel %vm444, %v435, %v439
    %v449 = vsel %vm444, %v429, %v433
    %v450 = vsel %vm444, %v431, %v435
    %v451 = vsel %vm444, %v441, %v429
    %v452 = vsel %vm444, %v443, %v431
    %v453 = vlaneseq
    %v454 = vshrl.u32 %v453, 7
    %v455 = vsub.s32 3, %v454
    %v456 = vrot.slane %v57, %v455
    %v457 = vlaneseq
    %v458 = vshrl.u32 %v457, 7
    %v459 = vsub.s32 3, %v458
    %v460 = vrot.slane %v58, %v459
    %v461 = vlaneseq
    %v462 = vshrl.u32 %v461, 7
    %v463 = vsub.s32 3, %v462
    %v464 = vrot.slane %v59, %v463
    %v465 = vlaneseq
    %v466 = vshrl.u32 %v465, 7
    %v467 = vsub.s32 3, %v466
    %v468 = vrot.slane %v60, %v467
    %v469 = vmul.f32 %v451, %v456
    %v470 = vmul.f32 %v449, %v460
    %v471 = vmul.f32 %v447, %v464
    %v472 = vmul.f32 %v445, %v468
    %v473 = vmul.f32 %v452, %v456
    %v474 = vmul.f32 %v450, %v460
    %v475 = vmul.f32 %v448, %v464
    %v476 = vmul.f32 %v446, %v468
    %v477 = vpack.c.bf16 %v473, %v469
    %v478 = vpack.c.bf16 %v474, %v470
    %v479 = vpack.c.bf16 %v475, %v471
    %v480 = vpack.c.bf16 %v476, %v472
    %v485 = vunpack.c.l.b16 %v477
    %v486 = vunpack.c.l.b16 %v478
    %v487 = vunpack.c.l.b16 %v479
    %v488 = vunpack.c.l.b16 %v480
    %v489 = vunpack.c.h.b16 %v477
    %v490 = vunpack.c.h.b16 %v478
    %v491 = vunpack.c.h.b16 %v479
    %v492 = vunpack.c.h.b16 %v480
    %v493 = vpack.c.b16 %v486, %v485
    %v494 = vpack.c.b16 %v488, %v487
    %v495 = vpack.c.b16 %v490, %v489
    %v496 = vpack.c.b16 %v492, %v491
    %501 = vst [vmem:[#allocation2 + $0x60] sm:$0xff] %v493
    %502 = vst [vmem:[#allocation2 + $0x68] sm:$0xff] %v494
    %503 = vst [vmem:[#allocation2 + $0x70] sm:$0xff] %v495
    %504 = vst [vmem:[#allocation2 + $0x78] sm:$0xff] %v496
    %v505 = vpack.c.bf16 %v191, %v187
    %v506 = vpack.c.bf16 %v192, %v188
    %v507 = vpack.c.bf16 %v193, %v189
    %v508 = vpack.c.bf16 %v194, %v190
    %v513 = vunpack.c.l.b16 %v505
    %v514 = vunpack.c.l.b16 %v506
    %v515 = vunpack.c.l.b16 %v507
    %v516 = vunpack.c.l.b16 %v508
    %v517 = vunpack.c.h.b16 %v505
    %v518 = vunpack.c.h.b16 %v506
    %v519 = vunpack.c.h.b16 %v507
    %v520 = vunpack.c.h.b16 %v508
    %v521 = vpack.c.b16 %v514, %v513
    %v522 = vpack.c.b16 %v516, %v515
    %v523 = vpack.c.b16 %v518, %v517
    %v524 = vpack.c.b16 %v520, %v519
    %529 = vst [vmem:[#allocation2 + $0x80] sm:$0xff] %v521
    %530 = vst [vmem:[#allocation2 + $0x88] sm:$0xff] %v522
    %531 = vst [vmem:[#allocation2 + $0x90] sm:$0xff] %v523
    %532 = vst [vmem:[#allocation2 + $0x98] sm:$0xff] %v524
    %533 = vrot.lane.b32.xlu0 %v187, 127
    %v534 = vpop.permute.xlu0 %533
    %535 = vrot.lane.b32.xlu0 %v191, 127
    %v536 = vpop.permute.xlu0 %535
    %537 = vrot.lane.b32.xlu0 %v188, 127
    %v538 = vpop.permute.xlu0 %537
    %539 = vrot.lane.b32.xlu0 %v192, 127
    %v540 = vpop.permute.xlu0 %539
    %541 = vrot.lane.b32.xlu0 %v189, 127
    %v542 = vpop.permute.xlu0 %541
    %543 = vrot.lane.b32.xlu0 %v193, 127
    %v544 = vpop.permute.xlu0 %543
    %545 = vrot.lane.b32.xlu0 %v190, 127
    %v546 = vpop.permute.xlu0 %545
    %547 = vrot.lane.b32.xlu0 %v194, 127
    %v548 = vpop.permute.xlu0 %547
    %vm549 = vcmp.lt.s32.totalorder %v212, 127
    %v550 = vsel %vm549, %v542, %v546
    %v551 = vsel %vm549, %v544, %v548
    %v552 = vsel %vm549, %v538, %v542
    %v553 = vsel %vm549, %v540, %v544
    %v554 = vsel %vm549, %v534, %v538
    %v555 = vsel %vm549, %v536, %v540
    %v556 = vsel %vm549, %v546, %v534
    %v557 = vsel %vm549, %v548, %v536
    %v558 = vlaneseq
    %v559 = vshrl.u32 %v558, 7
    %v560 = vsub.s32 4, %v559
    %v561 = vrot.slane %v57, %v560
    %v562 = vlaneseq
    %v563 = vshrl.u32 %v562, 7
    %v564 = vsub.s32 4, %v563
    %v565 = vrot.slane %v58, %v564
    %v566 = vlaneseq
    %v567 = vshrl.u32 %v566, 7
    %v568 = vsub.s32 4, %v567
    %v569 = vrot.slane %v59, %v568
    %v570 = vlaneseq
    %v571 = vshrl.u32 %v570, 7
    %v572 = vsub.s32 4, %v571
    %v573 = vrot.slane %v60, %v572
    %v574 = vmul.f32 %v554, %v561
    %v575 = vmul.f32 %v552, %v565
    %v576 = vmul.f32 %v550, %v569
    %v577 = vmul.f32 %v556, %v573
    %v578 = vmul.f32 %v555, %v561
    %v579 = vmul.f32 %v553, %v565
    %v580 = vmul.f32 %v551, %v569
    %v581 = vmul.f32 %v557, %v573
    %v582 = vpack.c.bf16 %v578, %v574
    %v583 = vpack.c.bf16 %v579, %v575
    %v584 = vpack.c.bf16 %v580, %v576
    %v585 = vpack.c.bf16 %v581, %v577
    %v590 = vunpack.c.l.b16 %v582
    %v591 = vunpack.c.l.b16 %v583
    %v592 = vunpack.c.l.b16 %v584
    %v593 = vunpack.c.l.b16 %v585
    %v594 = vunpack.c.h.b16 %v582
    %v595 = vunpack.c.h.b16 %v583
    %v596 = vunpack.c.h.b16 %v584
    %v597 = vunpack.c.h.b16 %v585
    %v598 = vpack.c.b16 %v591, %v590
    %v599 = vpack.c.b16 %v593, %v592
    %v600 = vpack.c.b16 %v595, %v594
    %v601 = vpack.c.b16 %v597, %v596
    %606 = vst [vmem:[#allocation2 + $0xa0] sm:$0xff] %v598
    %607 = vst [vmem:[#allocation2 + $0xa8] sm:$0xff] %v599
    %608 = vst [vmem:[#allocation2 + $0xb0] sm:$0xff] %v600
    %609 = vst [vmem:[#allocation2 + $0xb8] sm:$0xff] %v601
    %610 = vrot.lane.b32.xlu0 %v187, 113
    %v611 = vpop.permute.xlu0 %610
    %612 = vrot.lane.b32.xlu0 %v191, 113
    %v613 = vpop.permute.xlu0 %612
    %614 = vrot.lane.b32.xlu0 %v188, 113
    %v615 = vpop.permute.xlu0 %614
    %616 = vrot.lane.b32.xlu0 %v192, 113
    %v617 = vpop.permute.xlu0 %616
    %618 = vrot.lane.b32.xlu0 %v189, 113
    %v619 = vpop.permute.xlu0 %618
    %620 = vrot.lane.b32.xlu0 %v193, 113
    %v621 = vpop.permute.xlu0 %620
    %622 = vrot.lane.b32.xlu0 %v190, 113
    %v623 = vpop.permute.xlu0 %622
    %624 = vrot.lane.b32.xlu0 %v194, 113
    %v625 = vpop.permute.xlu0 %624
    %vm626 = vcmp.lt.s32.totalorder %v212, 113
    %v627 = vsel %vm626, %v619, %v623
    %v628 = vsel %vm626, %v621, %v625
    %v629 = vsel %vm626, %v615, %v619
    %v630 = vsel %vm626, %v617, %v621
    %v631 = vsel %vm626, %v611, %v615
    %v632 = vsel %vm626, %v613, %v617
    %v633 = vsel %vm626, %v623, %v611
    %v634 = vsel %vm626, %v625, %v613
    %v635 = vlaneseq
    %v636 = vshrl.u32 %v635, 7
    %v637 = vsub.s32 5, %v636
    %v638 = vrot.slane %v57, %v637
    %v639 = vlaneseq
    %v640 = vshrl.u32 %v639, 7
    %v641 = vsub.s32 5, %v640
    %v642 = vrot.slane %v58, %v641
    %v643 = vlaneseq
    %v644 = vshrl.u32 %v643, 7
    %v645 = vsub.s32 5, %v644
    %v646 = vrot.slane %v59, %v645
    %v647 = vlaneseq
    %v648 = vshrl.u32 %v647, 7
    %v649 = vsub.s32 5, %v648
    %v650 = vrot.slane %v60, %v649
    %v651 = vmul.f32 %v631, %v638
    %v652 = vmul.f32 %v629, %v642
    %v653 = vmul.f32 %v627, %v646
    %v654 = vmul.f32 %v633, %v650
    %v655 = vmul.f32 %v632, %v638
    %v656 = vmul.f32 %v630, %v642
    %v657 = vmul.f32 %v628, %v646
    %v658 = vmul.f32 %v634, %v650
    %v659 = vpack.c.bf16 %v655, %v651
    %v660 = vpack.c.bf16 %v656, %v652
    %v661 = vpack.c.bf16 %v657, %v653
    %v662 = vpack.c.bf16 %v658, %v654
    %v667 = vunpack.c.l.b16 %v659
    %v668 = vunpack.c.l.b16 %v660
    %v669 = vunpack.c.l.b16 %v661
    %v670 = vunpack.c.l.b16 %v662
    %v671 = vunpack.c.h.b16 %v659
    %v672 = vunpack.c.h.b16 %v660
    %v673 = vunpack.c.h.b16 %v661
    %v674 = vunpack.c.h.b16 %v662
    %v675 = vpack.c.b16 %v668, %v667
    %v676 = vpack.c.b16 %v670, %v669
    %v677 = vpack.c.b16 %v672, %v671
    %v678 = vpack.c.b16 %v674, %v673
    %683 = vst [vmem:[#allocation2 + $0xc0] sm:$0xff] %v675
    %684 = vst [vmem:[#allocation2 + $0xc8] sm:$0xff] %v676
    %685 = vst [vmem:[#allocation2 + $0xd0] sm:$0xff] %v677
    %686 = vst [vmem:[#allocation2 + $0xd8] sm:$0xff] %v678
    %687 = vrot.lane.b32.xlu0 %v187, 112
    %v688 = vpop.permute.xlu0 %687
    %689 = vrot.lane.b32.xlu0 %v191, 112
    %v690 = vpop.permute.xlu0 %689
    %691 = vrot.lane.b32.xlu0 %v188, 112
    %v692 = vpop.permute.xlu0 %691
    %693 = vrot.lane.b32.xlu0 %v192, 112
    %v694 = vpop.permute.xlu0 %693
    %695 = vrot.lane.b32.xlu0 %v189, 112
    %v696 = vpop.permute.xlu0 %695
    %697 = vrot.lane.b32.xlu0 %v193, 112
    %v698 = vpop.permute.xlu0 %697
    %699 = vrot.lane.b32.xlu0 %v190, 112
    %v700 = vpop.permute.xlu0 %699
    %701 = vrot.lane.b32.xlu0 %v194, 112
    %v702 = vpop.permute.xlu0 %701
    %vm703 = vcmp.lt.s32.totalorder %v212, 112
    %v704 = vsel %vm703, %v696, %v700
    %v705 = vsel %vm703, %v698, %v702
    %v706 = vsel %vm703, %v692, %v696
    %v707 = vsel %vm703, %v694, %v698
    %v708 = vsel %vm703, %v688, %v692
    %v709 = vsel %vm703, %v690, %v694
    %v710 = vsel %vm703, %v700, %v688
    %v711 = vsel %vm703, %v702, %v690
    %v712 = vlaneseq
    %v713 = vshrl.u32 %v712, 7
    %v714 = vsub.s32 6, %v713
    %v715 = vrot.slane %v57, %v714
    %v716 = vlaneseq
    %v717 = vshrl.u32 %v716, 7
    %v718 = vsub.s32 6, %v717
    %v719 = vrot.slane %v58, %v718
    %v720 = vlaneseq
    %v721 = vshrl.u32 %v720, 7
    %v722 = vsub.s32 6, %v721
    %v723 = vrot.slane %v59, %v722
    %v724 = vlaneseq
    %v725 = vshrl.u32 %v724, 7
    %v726 = vsub.s32 6, %v725
    %v727 = vrot.slane %v60, %v726
    %v728 = vmul.f32 %v708, %v715
    %v729 = vmul.f32 %v706, %v719
    %v730 = vmul.f32 %v704, %v723
    %v731 = vmul.f32 %v710, %v727
    %v732 = vmul.f32 %v709, %v715
    %v733 = vmul.f32 %v707, %v719
    %v734 = vmul.f32 %v705, %v723
    %v735 = vmul.f32 %v711, %v727
    %v736 = vpack.c.bf16 %v732, %v728
    %v737 = vpack.c.bf16 %v733, %v729
    %v738 = vpack.c.bf16 %v734, %v730
    %v739 = vpack.c.bf16 %v735, %v731
    %v744 = vunpack.c.l.b16 %v736
    %v745 = vunpack.c.l.b16 %v737
    %v746 = vunpack.c.l.b16 %v738
    %v747 = vunpack.c.l.b16 %v739
    %v748 = vunpack.c.h.b16 %v736
    %v749 = vunpack.c.h.b16 %v737
    %v750 = vunpack.c.h.b16 %v738
    %v751 = vunpack.c.h.b16 %v739
    %v752 = vpack.c.b16 %v745, %v744
    %v753 = vpack.c.b16 %v747, %v746
    %v754 = vpack.c.b16 %v749, %v748
    %v755 = vpack.c.b16 %v751, %v750
    %760 = vst [vmem:[#allocation2 + $0xe0] sm:$0xff] %v752
    %761 = vst [vmem:[#allocation2 + $0xe8] sm:$0xff] %v753
    %762 = vst [vmem:[#allocation2 + $0xf0] sm:$0xff] %v754
    %763 = vst [vmem:[#allocation2 + $0xf8] sm:$0xff] %v755
    %764 = vrot.lane.b32.xlu0 %v187, 111
    %v765 = vpop.permute.xlu0 %764
    %766 = vrot.lane.b32.xlu0 %v191, 111
    %v767 = vpop.permute.xlu0 %766
    %768 = vrot.lane.b32.xlu0 %v188, 111
    %v769 = vpop.permute.xlu0 %768
    %770 = vrot.lane.b32.xlu0 %v192, 111
    %v771 = vpop.permute.xlu0 %770
    %772 = vrot.lane.b32.xlu0 %v189, 111
    %v773 = vpop.permute.xlu0 %772
    %774 = vrot.lane.b32.xlu0 %v193, 111
    %v775 = vpop.permute.xlu0 %774
    %776 = vrot.lane.b32.xlu0 %v190, 111
    %v777 = vpop.permute.xlu0 %776
    %778 = vrot.lane.b32.xlu0 %v194, 111
    %v779 = vpop.permute.xlu0 %778
    %vm780 = vcmp.lt.s32.totalorder %v212, 111
    %v781 = vsel %vm780, %v773, %v777
    %v782 = vsel %vm780, %v775, %v779
    %v783 = vsel %vm780, %v769, %v773
    %v784 = vsel %vm780, %v771, %v775
    %v785 = vsel %vm780, %v765, %v769
    %v786 = vsel %vm780, %v767, %v771
    %v787 = vsel %vm780, %v777, %v765
    %v788 = vsel %vm780, %v779, %v767
    %v789 = vlaneseq
    %v790 = vshrl.u32 %v789, 7
    %v791 = vsub.s32 7, %v790
    %v792 = vrot.slane %v57, %v791
    %v793 = vlaneseq
    %v794 = vshrl.u32 %v793, 7
    %v795 = vsub.s32 7, %v794
    %v796 = vrot.slane %v58, %v795
    %v797 = vlaneseq
    %v798 = vshrl.u32 %v797, 7
    %v799 = vsub.s32 7, %v798
    %v800 = vrot.slane %v59, %v799
    %v801 = vlaneseq
    %v802 = vshrl.u32 %v801, 7
    %v803 = vsub.s32 7, %v802
    %v804 = vrot.slane %v60, %v803
    %v805 = vmul.f32 %v785, %v792
    %v806 = vmul.f32 %v783, %v796
    %v807 = vmul.f32 %v781, %v800
    %v808 = vmul.f32 %v787, %v804
    %v809 = vmul.f32 %v786, %v792
    %v810 = vmul.f32 %v784, %v796
    %v811 = vmul.f32 %v782, %v800
    %v812 = vmul.f32 %v788, %v804
    %v813 = vpack.c.bf16 %v809, %v805
    %v814 = vpack.c.bf16 %v810, %v806
    %v815 = vpack.c.bf16 %v811, %v807
    %v816 = vpack.c.bf16 %v812, %v808
    %v821 = vunpack.c.l.b16 %v813
    %v822 = vunpack.c.l.b16 %v814
    %v823 = vunpack.c.l.b16 %v815
    %v824 = vunpack.c.l.b16 %v816
    %v825 = vunpack.c.h.b16 %v813
    %v826 = vunpack.c.h.b16 %v814
    %v827 = vunpack.c.h.b16 %v815
    %v828 = vunpack.c.h.b16 %v816
    %v829 = vpack.c.b16 %v822, %v821
    %v830 = vpack.c.b16 %v824, %v823
    %v831 = vpack.c.b16 %v826, %v825
    %v832 = vpack.c.b16 %v828, %v827
    %837 = vst [vmem:[#allocation2 + $0x100] sm:$0xff] %v829
    %838 = vst [vmem:[#allocation2 + $0x108] sm:$0xff] %v830
    %839 = vst [vmem:[#allocation2 + $0x110] sm:$0xff] %v831
    %840 = vst [vmem:[#allocation2 + $0x118] sm:$0xff] %v832
    %v841 = vld [vmem:[#allocation2] sm:$0xff]
    %v842 = vld [vmem:[#allocation2 + $0x8] sm:$0xff]
    %v843 = vld [vmem:[#allocation2 + $0x10] sm:$0xff]
    %v844 = vld [vmem:[#allocation2 + $0x18] sm:$0xff]
    %v845 = vld [vmem:[#allocation2 + $0x20] sm:$0xff]
    %v846 = vld [vmem:[#allocation2 + $0x28] sm:$0xff]
    %v847 = vld [vmem:[#allocation2 + $0x30] sm:$0xff]
    %v848 = vld [vmem:[#allocation2 + $0x38] sm:$0xff]
    %v849 = vld [vmem:[#allocation2 + $0x40] sm:$0xff]
    %v850 = vld [vmem:[#allocation2 + $0x48] sm:$0xff]
    %v851 = vld [vmem:[#allocation2 + $0x50] sm:$0xff]
    %v852 = vld [vmem:[#allocation2 + $0x58] sm:$0xff]
    %v853 = vld [vmem:[#allocation2 + $0x60] sm:$0xff]
    %v854 = vld [vmem:[#allocation2 + $0x68] sm:$0xff]
    %v855 = vld [vmem:[#allocation2 + $0x70] sm:$0xff]
    %v856 = vld [vmem:[#allocation2 + $0x78] sm:$0xff]
    %v857 = vld [vmem:[#allocation2 + $0x80] sm:$0xff]
    %v858 = vld [vmem:[#allocation2 + $0x88] sm:$0xff]
    %v859 = vld [vmem:[#allocation2 + $0x90] sm:$0xff]
    %v860 = vld [vmem:[#allocation2 + $0x98] sm:$0xff]
    %v861 = vld [vmem:[#allocation2 + $0xa0] sm:$0xff]
    %v862 = vld [vmem:[#allocation2 + $0xa8] sm:$0xff]
    %v863 = vld [vmem:[#allocation2 + $0xb0] sm:$0xff]
    %v864 = vld [vmem:[#allocation2 + $0xb8] sm:$0xff]
    %v865 = vld [vmem:[#allocation2 + $0xc0] sm:$0xff]
    %v866 = vld [vmem:[#allocation2 + $0xc8] sm:$0xff]
    %v867 = vld [vmem:[#allocation2 + $0xd0] sm:$0xff]
    %v868 = vld [vmem:[#allocation2 + $0xd8] sm:$0xff]
    %v869 = vld [vmem:[#allocation2 + $0xe0] sm:$0xff]
    %v870 = vld [vmem:[#allocation2 + $0xe8] sm:$0xff]
    %v871 = vld [vmem:[#allocation2 + $0xf0] sm:$0xff]
    %v872 = vld [vmem:[#allocation2 + $0xf8] sm:$0xff]
    %v873 = vld [vmem:[#allocation2 + $0x100] sm:$0xff]
    %v874 = vld [vmem:[#allocation2 + $0x108] sm:$0xff]
    %v875 = vld [vmem:[#allocation2 + $0x110] sm:$0xff]
    %v876 = vld [vmem:[#allocation2 + $0x118] sm:$0xff]
    %v877 = vld [vmem:[%s4] sm:$0xff]
    %v878 = vld [vmem:[%s4 + $0x8] sm:$0xff]
    %v879 = vld [vmem:[%s5] sm:$0xff]
    %v880 = vld [vmem:[%s5 + $0x8] sm:$0xff]
    %882 = vset.pattern.permute.xlu0 0
    %883 = vperm.xlu0 %882, %v879
    %v884 = vpop.permute.xlu0 %883
    %887 = vset.pattern.permute.xlu0 0
    %888 = vperm.xlu0 %887, %v880
    %v889 = vpop.permute.xlu0 %888
    %v893 = vunpack.c.l.b16 %v877
    %v894 = vunpack.c.h.b16 %v877
    %v895 = vunpack.c.l.b16 %v878
    %v896 = vunpack.c.h.b16 %v878
    %v897 = vpack.c.b16 %v895, %v893
    %v898 = vpack.c.b16 %v896, %v894
    %v936 = vunpack.c.l.b16 %v841
    %v937 = vunpack.c.h.b16 %v841
    %v938 = vunpack.c.l.b16 %v842
    %v939 = vunpack.c.h.b16 %v842
    %v940 = vunpack.c.l.b16 %v843
    %v941 = vunpack.c.h.b16 %v843
    %v942 = vunpack.c.l.b16 %v844
    %v943 = vunpack.c.h.b16 %v844
    %v944 = vunpack.c.l.b16 %v845
    %v945 = vunpack.c.h.b16 %v845
    %v946 = vunpack.c.l.b16 %v846
    %v947 = vunpack.c.h.b16 %v846
    %v948 = vunpack.c.l.b16 %v847
    %v949 = vunpack.c.h.b16 %v847
    %v950 = vunpack.c.l.b16 %v848
    %v951 = vunpack.c.h.b16 %v848
    %v952 = vunpack.c.l.b16 %v849
    %v953 = vunpack.c.h.b16 %v849
    %v954 = vunpack.c.l.b16 %v850
    %v955 = vunpack.c.h.b16 %v850
    %v956 = vunpack.c.l.b16 %v851
    %v957 = vunpack.c.h.b16 %v851
    %v958 = vunpack.c.l.b16 %v852
    %v959 = vunpack.c.h.b16 %v852
    %v960 = vunpack.c.l.b16 %v853
    %v961 = vunpack.c.h.b16 %v853
    %v962 = vunpack.c.l.b16 %v854
    %v963 = vunpack.c.h.b16 %v854
    %v964 = vunpack.c.l.b16 %v855
    %v965 = vunpack.c.h.b16 %v855
    %v966 = vunpack.c.l.b16 %v856
    %v967 = vunpack.c.h.b16 %v856
    %v968 = vunpack.c.l.b16 %v857
    %v969 = vunpack.c.h.b16 %v857
    %v970 = vunpack.c.l.b16 %v858
    %v971 = vunpack.c.h.b16 %v858
    %v972 = vunpack.c.l.b16 %v859
    %v973 = vunpack.c.h.b16 %v859
    %v974 = vunpack.c.l.b16 %v860
    %v975 = vunpack.c.h.b16 %v860
    %v976 = vunpack.c.l.b16 %v861
    %v977 = vunpack.c.h.b16 %v861
    %v978 = vunpack.c.l.b16 %v862
    %v979 = vunpack.c.h.b16 %v862
    %v980 = vunpack.c.l.b16 %v863
    %v981 = vunpack.c.h.b16 %v863
    %v982 = vunpack.c.l.b16 %v864
    %v983 = vunpack.c.h.b16 %v864
    %v984 = vunpack.c.l.b16 %v865
    %v985 = vunpack.c.h.b16 %v865
    %v986 = vunpack.c.l.b16 %v866
    %v987 = vunpack.c.h.b16 %v866
    %v988 = vunpack.c.l.b16 %v867
    %v989 = vunpack.c.h.b16 %v867
    %v990 = vunpack.c.l.b16 %v868
    %v991 = vunpack.c.h.b16 %v868
    %v992 = vunpack.c.l.b16 %v869
    %v993 = vunpack.c.h.b16 %v869
    %v994 = vunpack.c.l.b16 %v870
    %v995 = vunpack.c.h.b16 %v870
    %v996 = vunpack.c.l.b16 %v871
    %v997 = vunpack.c.h.b16 %v871
    %v998 = vunpack.c.l.b16 %v872
    %v999 = vunpack.c.h.b16 %v872
    %v1000 = vunpack.c.l.b16 %v873
    %v1001 = vunpack.c.h.b16 %v873
    %v1002 = vunpack.c.l.b16 %v874
    %v1003 = vunpack.c.h.b16 %v874
    %v1004 = vunpack.c.l.b16 %v875
    %v1005 = vunpack.c.h.b16 %v875
    %v1006 = vunpack.c.l.b16 %v876
    %v1007 = vunpack.c.h.b16 %v876
    %v1008 = vpack.c.b16 %v940, %v936
    %v1009 = vpack.c.b16 %v941, %v937
    %v1010 = vpack.c.b16 %v942, %v938
    %v1011 = vpack.c.b16 %v943, %v939
    %v1012 = vpack.c.b16 %v948, %v944
    %v1013 = vpack.c.b16 %v949, %v945
    %v1014 = vpack.c.b16 %v950, %v946
    %v1015 = vpack.c.b16 %v951, %v947
    %v1016 = vpack.c.b16 %v956, %v952
    %v1017 = vpack.c.b16 %v957, %v953
    %v1018 = vpack.c.b16 %v958, %v954
    %v1019 = vpack.c.b16 %v959, %v955
    %v1020 = vpack.c.b16 %v964, %v960
    %v1021 = vpack.c.b16 %v965, %v961
    %v1022 = vpack.c.b16 %v966, %v962
    %v1023 = vpack.c.b16 %v967, %v963
    %v1024 = vpack.c.b16 %v972, %v968
    %v1025 = vpack.c.b16 %v973, %v969
    %v1026 = vpack.c.b16 %v974, %v970
    %v1027 = vpack.c.b16 %v975, %v971
    %v1028 = vpack.c.b16 %v980, %v976
    %v1029 = vpack.c.b16 %v981, %v977
    %v1030 = vpack.c.b16 %v982, %v978
    %v1031 = vpack.c.b16 %v983, %v979
    %v1032 = vpack.c.b16 %v988, %v984
    %v1033 = vpack.c.b16 %v989, %v985
    %v1034 = vpack.c.b16 %v990, %v986
    %v1035 = vpack.c.b16 %v991, %v987
    %v1036 = vpack.c.b16 %v996, %v992
    %v1037 = vpack.c.b16 %v997, %v993
    %v1038 = vpack.c.b16 %v998, %v994
    %v1039 = vpack.c.b16 %v999, %v995
    %v1040 = vpack.c.b16 %v1004, %v1000
    %v1041 = vpack.c.b16 %v1005, %v1001
    %v1042 = vpack.c.b16 %v1006, %v1002
    %v1043 = vpack.c.b16 %v1007, %v1003
    %vm1080 = vcmask 130048
    %v1082 = vsel %vm1080, %v898, 0
    %1084 = vmatprep.subr.bf16.mxu0 %v1037
    %1085 = vmatpush1.bf16.msra.mxu0 %v1036
    %1086 = vmatprep.subr.bf16.mxu0 %v1033
    %1087 = vmatpush1.bf16.msra.mxu0 %v1032
    %1088 = vmatprep.subr.bf16.mxu0 %v1029
    %1089 = vmatpush1.bf16.msra.mxu0 %v1028
    %1090 = vmatprep.subr.bf16.mxu0 %v1025
    %1091 = vmatpush1.bf16.msra.mxu0 %v1024
    %1092 = vmatprep.subr.bf16.mxu0 %v1021
    %1093 = vmatpush1.bf16.msra.mxu0 %v1020
    %1094 = vmatprep.subr.bf16.mxu0 %v1017
    %1095 = vmatpush1.bf16.msra.mxu0 %v1016
    %1096 = vmatprep.subr.bf16.mxu0 %v1013
    %1097 = vmatpush1.bf16.msra.mxu0 %v1012
    %1098 = vmatprep.subr.bf16.mxu0 %v1009
    %1099 = vmatpush1.bf16.msra.mxu0 %v1008
    %1100 = vmatprep.subr.bf16.mxu0 0
    %1101 = vmatpush2.bf16.msra.mxu0 0
    %1102 = vmatprep.subr.bf16.mxu0 0
    %1103 = vmatpush2.bf16.msra.mxu0 0
    %1104 = vmatprep.subr.bf16.mxu0 0
    %1105 = vmatpush2.bf16.msra.mxu0 0
    %1106 = vmatprep.subr.bf16.mxu0 0
    %1107 = vmatpush2.bf16.msra.mxu0 0
    %1108 = vmatprep.subr.bf16.mxu0 0
    %1109 = vmatpush2.bf16.msra.mxu0 0
    %1110 = vmatprep.subr.bf16.mxu0 0
    %1111 = vmatpush2.bf16.msra.mxu0 0
    %1112 = vmatprep.subr.bf16.mxu0 0
    %1113 = vmatpush2.bf16.msra.mxu0 0
    %1114 = vmatprep.subr.bf16.mxu0 %v1041
    %1115 = vmatpush2.bf16.msra.mxu0 %v1040
    %1116 = vmatprep.mubr.bf16.mxu0 %v1082
    %1117 = vmatmul.mubr.bf16.gmra.mxu0 %v897
    %v1118 = vpop.f32.mrf.mxu0
    %v1119 = vadd.f32 %v884, %v1118
    %v1120 = vpop.f32.mrf.mxu0
    %v1121 = vadd.f32 %v884, %v1120
    %v1122 = vpop.f32.mrf.mxu0
    %v1123 = vadd.f32 %v889, %v1122
    %v1124 = vpop.f32.mrf.mxu0
    %v1125 = vadd.f32 %v889, %v1124
    %1126 = vdwg.mxu0
    %1127 = vmatprep.subr.bf16.mxu0 %v1039
    %1128 = vmatpush1.bf16.msra.mxu0 %v1038
    %1129 = vmatprep.subr.bf16.mxu0 %v1035
    %1130 = vmatpush1.bf16.msra.mxu0 %v1034
    %1131 = vmatprep.subr.bf16.mxu0 %v1031
    %1132 = vmatpush1.bf16.msra.mxu0 %v1030
    %1133 = vmatprep.subr.bf16.mxu0 %v1027
    %1134 = vmatpush1.bf16.msra.mxu0 %v1026
    %1135 = vmatprep.subr.bf16.mxu0 %v1023
    %1136 = vmatpush1.bf16.msra.mxu0 %v1022
    %1137 = vmatprep.subr.bf16.mxu0 %v1019
    %1138 = vmatpush1.bf16.msra.mxu0 %v1018
    %1139 = vmatprep.subr.bf16.mxu0 %v1015
    %1140 = vmatpush1.bf16.msra.mxu0 %v1014
    %1141 = vmatprep.subr.bf16.mxu0 %v1011
    %1142 = vmatpush1.bf16.msra.mxu0 %v1010
    %1143 = vmatprep.subr.bf16.mxu0 0
    %1144 = vmatpush2.bf16.msra.mxu0 0
    %1145 = vmatprep.subr.bf16.mxu0 0
    %1146 = vmatpush2.bf16.msra.mxu0 0
    %1147 = vmatprep.subr.bf16.mxu0 0
    %1148 = vmatpush2.bf16.msra.mxu0 0
    %1149 = vmatprep.subr.bf16.mxu0 0
    %1150 = vmatpush2.bf16.msra.mxu0 0
    %1151 = vmatprep.subr.bf16.mxu0 0
    %1152 = vmatpush2.bf16.msra.mxu0 0
    %1153 = vmatprep.subr.bf16.mxu0 0
    %1154 = vmatpush2.bf16.msra.mxu0 0
    %1155 = vmatprep.subr.bf16.mxu0 0
    %1156 = vmatpush2.bf16.msra.mxu0 0
    %1157 = vmatprep.subr.bf16.mxu0 %v1043
    %1158 = vmatpush2.bf16.msra.mxu0 %v1042
    %1159 = vmatprep.mubr.bf16.mxu0 %v1082
    %1160 = vmatmul.mubr.bf16.gmra.mxu0 %v897
    %v1161 = vpop.f32.mrf.mxu0
    %v1162 = vadd.f32 %v884, %v1161
    %v1163 = vpop.f32.mrf.mxu0
    %v1164 = vadd.f32 %v884, %v1163
    %v1165 = vpop.f32.mrf.mxu0
    %v1166 = vadd.f32 %v889, %v1165
    %v1167 = vpop.f32.mrf.mxu0
    %v1168 = vadd.f32 %v889, %v1167
    %1169 = vdwg.mxu0
    %v1170 = vld [vmem:[%s6] sm:$0xff]
    %v1171 = vld [vmem:[%s6 + $0x8] sm:$0xff]
    %v1172 = vld [vmem:[%s7] sm:$0xff]
    %v1173 = vld [vmem:[%s7 + $0x8] sm:$0xff]
    %v1174 = vadd.f32 %v1119, %v1121
    %v1175 = vadd.f32 %v1174, %v1162
    %v1176 = vadd.f32 %v1175, %v1164
    %1177 = vadd.xlane.f32.xlu0 %v1176
    %v1178 = vpop.xlane.xlu0 %1177
    %v1179 = vadd.f32 %v1123, %v1125
    %v1180 = vadd.f32 %v1179, %v1166
    %v1181 = vadd.f32 %v1180, %v1168
    %1182 = vadd.xlane.f32.xlu0 %v1181
    %v1183 = vpop.xlane.xlu0 %1182
    %v1184 = vmul.f32 %v1178, 0.001953125
    %v1185 = vmul.f32 %v1183, 0.001953125
    %v1186 = vsub.f32 %v1119, %v1184
    %v1187 = vsub.f32 %v1121, %v1184
    %v1188 = vsub.f32 %v1162, %v1184
    %v1189 = vsub.f32 %v1164, %v1184
    %v1190 = vsub.f32 %v1123, %v1185
    %v1191 = vsub.f32 %v1125, %v1185
    %v1192 = vsub.f32 %v1166, %v1185
    %v1193 = vsub.f32 %v1168, %v1185
    %v1194 = vmul.f32 %v1186, %v1186
    %v1195 = vmul.f32 %v1187, %v1187
    %v1196 = vmul.f32 %v1188, %v1188
    %v1197 = vmul.f32 %v1189, %v1189
    %v1198 = vmul.f32 %v1190, %v1190
    %v1199 = vmul.f32 %v1191, %v1191
    %v1200 = vmul.f32 %v1192, %v1192
    %v1201 = vmul.f32 %v1193, %v1193
    %v1202 = vadd.f32 %v1194, %v1195
    %v1203 = vadd.f32 %v1202, %v1196
    %v1204 = vadd.f32 %v1203, %v1197
    %1205 = vadd.xlane.f32.xlu0 %v1204
    %v1206 = vpop.xlane.xlu0 %1205
    %v1207 = vadd.f32 %v1198, %v1199
    %v1208 = vadd.f32 %v1207, %v1200
    %v1209 = vadd.f32 %v1208, %v1201
    %1210 = vadd.xlane.f32.xlu0 %v1209
    %v1211 = vpop.xlane.xlu0 %1210
    %v1212 = vmul.f32 %v1206, 0.001953125
    %v1213 = vmul.f32 %v1211, 0.001953125
    %v1214 = vadd.f32 %v1212, 0.0001
    %v1215 = vadd.f32 %v1213, 0.0001
    %v1216 = vrsqrt.pop %v1214
    %v1217 = vrsqrt.pop %v1215
    %v1218 = vmul.f32 %v1170, %v1216
    %v1219 = vmul.f32 %v1171, %v1217
    %1221 = vset.pattern.permute.xlu0 0
    %1222 = vperm.xlu0 %1221, %v1218
    %v1223 = vpop.permute.xlu0 %1222
    %1226 = vset.pattern.permute.xlu0 0
    %1227 = vperm.xlu0 %1226, %v1219
    %v1228 = vpop.permute.xlu0 %1227
    %v1230 = vmul.f32 %v1186, %v1223
    %v1231 = vmul.f32 %v1187, %v1223
    %v1232 = vmul.f32 %v1188, %v1223
    %v1233 = vmul.f32 %v1189, %v1223
    %v1234 = vmul.f32 %v1190, %v1228
    %v1235 = vmul.f32 %v1191, %v1228
    %v1236 = vmul.f32 %v1192, %v1228
    %v1237 = vmul.f32 %v1193, %v1228
    %1239 = vset.pattern.permute.xlu0 0
    %1240 = vperm.xlu0 %1239, %v1172
    %v1241 = vpop.permute.xlu0 %1240
    %1244 = vset.pattern.permute.xlu0 0
    %1245 = vperm.xlu0 %1244, %v1173
    %v1246 = vpop.permute.xlu0 %1245
    %v1248 = vadd.f32 %v1230, %v1241
    %v1249 = vadd.f32 %v1231, %v1241
    %v1250 = vadd.f32 %v1232, %v1241
    %v1251 = vadd.f32 %v1233, %v1241
    %v1252 = vadd.f32 %v1234, %v1246
    %v1253 = vadd.f32 %v1235, %v1246
    %v1254 = vadd.f32 %v1236, %v1246
    %v1255 = vadd.f32 %v1237, %v1246
    %vm1256 = vcmp.gt.f32.partialorder %v1248, 0.0
    %vm1257 = vcmp.gt.f32.partialorder %v1249, 0.0
    %vm1258 = vcmp.gt.f32.partialorder %v1250, 0.0
    %vm1259 = vcmp.gt.f32.partialorder %v1251, 0.0
    %vm1260 = vcmp.gt.f32.partialorder %v1252, 0.0
    %vm1261 = vcmp.gt.f32.partialorder %v1253, 0.0
    %vm1262 = vcmp.gt.f32.partialorder %v1254, 0.0
    %vm1263 = vcmp.gt.f32.partialorder %v1255, 0.0
    %v1264 = vmin.f32 %v1248, 0.0
    %v1265 = vmin.f32 %v1249, 0.0
    %v1266 = vmin.f32 %v1250, 0.0
    %v1267 = vmin.f32 %v1251, 0.0
    %v1268 = vmin.f32 %v1252, 0.0
    %v1269 = vmin.f32 %v1253, 0.0
    %v1270 = vmin.f32 %v1254, 0.0
    %v1271 = vmin.f32 %v1255, 0.0
    %v1272 = vmul.f32 %v1264, 1.442695
    %v1273 = vpow.pop %v1272
    %v1274 = vmul.f32 %v1265, 1.442695
    %v1275 = vpow.pop %v1274
    %v1276 = vmul.f32 %v1266, 1.442695
    %v1277 = vpow.pop %v1276
    %v1278 = vmul.f32 %v1267, 1.442695
    %v1279 = vpow.pop %v1278
    %v1280 = vmul.f32 %v1268, 1.442695
    %v1281 = vpow.pop %v1280
    %v1282 = vmul.f32 %v1269, 1.442695
    %v1283 = vpow.pop %v1282
    %v1284 = vmul.f32 %v1270, 1.442695
    %v1285 = vpow.pop %v1284
    %v1286 = vmul.f32 %v1271, 1.442695
    %v1287 = vpow.pop %v1286
    %v1288 = vsub.f32 %v1273, 1.0
    %v1289 = vsub.f32 %v1275, 1.0
    %v1290 = vsub.f32 %v1277, 1.0
    %v1291 = vsub.f32 %v1279, 1.0
    %v1292 = vsub.f32 %v1281, 1.0
    %v1293 = vsub.f32 %v1283, 1.0
    %v1294 = vsub.f32 %v1285, 1.0
    %v1295 = vsub.f32 %v1287, 1.0
    %v1296 = vsel %vm1256, %v1248, %v1288
    %v1297 = vsel %vm1257, %v1249, %v1289
    %v1298 = vsel %vm1258, %v1250, %v1290
    %v1299 = vsel %vm1259, %v1251, %v1291
    %v1300 = vsel %vm1260, %v1252, %v1292
    %v1301 = vsel %vm1261, %v1253, %v1293
    %v1302 = vsel %vm1262, %v1254, %v1294
    %v1303 = vsel %vm1263, %v1255, %v1295
    %1304 = vrot.lane.b32.xlu0 %v1296, 17
    %v1305 = vpop.permute.xlu0 %1304
    %1306 = vrot.lane.b32.xlu0 %v1300, 17
    %v1307 = vpop.permute.xlu0 %1306
    %1308 = vrot.lane.b32.xlu0 %v1297, 17
    %v1309 = vpop.permute.xlu0 %1308
    %1310 = vrot.lane.b32.xlu0 %v1301, 17
    %v1311 = vpop.permute.xlu0 %1310
    %1312 = vrot.lane.b32.xlu0 %v1298, 17
    %v1313 = vpop.permute.xlu0 %1312
    %1314 = vrot.lane.b32.xlu0 %v1302, 17
    %v1315 = vpop.permute.xlu0 %1314
    %1316 = vrot.lane.b32.xlu0 %v1299, 17
    %v1317 = vpop.permute.xlu0 %1316
    %1318 = vrot.lane.b32.xlu0 %v1303, 17
    %v1319 = vpop.permute.xlu0 %1318
    %v1320 = vsel %vm213, %v1313, %v1317
    %v1321 = vsel %vm213, %v1315, %v1319
    %v1322 = vsel %vm213, %v1309, %v1313
    %v1323 = vsel %vm213, %v1311, %v1315
    %v1324 = vsel %vm213, %v1305, %v1309
    %v1325 = vsel %vm213, %v1307, %v1311
    %v1326 = vsel %vm213, %v1317, %v1305
    %v1327 = vsel %vm213, %v1319, %v1307
    %v1328 = vmul.f32 %v1326, %v225
    %v1329 = vmul.f32 %v1324, %v229
    %v1330 = vmul.f32 %v1322, %v233
    %v1331 = vmul.f32 %v1320, %v237
    %v1332 = vmul.f32 %v1327, %v225
    %v1333 = vmul.f32 %v1325, %v229
    %v1334 = vmul.f32 %v1323, %v233
    %v1335 = vmul.f32 %v1321, %v237
    %v1336 = vpack.c.bf16 %v1332, %v1328
    %v1337 = vpack.c.bf16 %v1333, %v1329
    %v1338 = vpack.c.bf16 %v1334, %v1330
    %v1339 = vpack.c.bf16 %v1335, %v1331
    %v1344 = vunpack.c.l.b16 %v1336
    %v1345 = vunpack.c.l.b16 %v1337
    %v1346 = vunpack.c.l.b16 %v1338
    %v1347 = vunpack.c.l.b16 %v1339
    %v1348 = vunpack.c.h.b16 %v1336
    %v1349 = vunpack.c.h.b16 %v1337
    %v1350 = vunpack.c.h.b16 %v1338
    %v1351 = vunpack.c.h.b16 %v1339
    %v1352 = vpack.c.b16 %v1345, %v1344
    %v1353 = vpack.c.b16 %v1347, %v1346
    %v1354 = vpack.c.b16 %v1349, %v1348
    %v1355 = vpack.c.b16 %v1351, %v1350
    %1360 = vst [vmem:[#allocation3] sm:$0xff] %v1352
    %1361 = vst [vmem:[#allocation3 + $0x8] sm:$0xff] %v1353
    %1362 = vst [vmem:[#allocation3 + $0x10] sm:$0xff] %v1354
    %1363 = vst [vmem:[#allocation3 + $0x18] sm:$0xff] %v1355
    %1364 = vrot.lane.b32.xlu0 %v1296, 16
    %v1365 = vpop.permute.xlu0 %1364
    %1366 = vrot.lane.b32.xlu0 %v1300, 16
    %v1367 = vpop.permute.xlu0 %1366
    %1368 = vrot.lane.b32.xlu0 %v1297, 16
    %v1369 = vpop.permute.xlu0 %1368
    %1370 = vrot.lane.b32.xlu0 %v1301, 16
    %v1371 = vpop.permute.xlu0 %1370
    %1372 = vrot.lane.b32.xlu0 %v1298, 16
    %v1373 = vpop.permute.xlu0 %1372
    %1374 = vrot.lane.b32.xlu0 %v1302, 16
    %v1375 = vpop.permute.xlu0 %1374
    %1376 = vrot.lane.b32.xlu0 %v1299, 16
    %v1377 = vpop.permute.xlu0 %1376
    %1378 = vrot.lane.b32.xlu0 %v1303, 16
    %v1379 = vpop.permute.xlu0 %1378
    %v1380 = vsel %vm290, %v1373, %v1377
    %v1381 = vsel %vm290, %v1375, %v1379
    %v1382 = vsel %vm290, %v1369, %v1373
    %v1383 = vsel %vm290, %v1371, %v1375
    %v1384 = vsel %vm290, %v1365, %v1369
    %v1385 = vsel %vm290, %v1367, %v1371
    %v1386 = vsel %vm290, %v1377, %v1365
    %v1387 = vsel %vm290, %v1379, %v1367
    %v1388 = vmul.f32 %v1386, %v302
    %v1389 = vmul.f32 %v1384, %v306
    %v1390 = vmul.f32 %v1382, %v310
    %v1391 = vmul.f32 %v1380, %v314
    %v1392 = vmul.f32 %v1387, %v302
    %v1393 = vmul.f32 %v1385, %v306
    %v1394 = vmul.f32 %v1383, %v310
    %v1395 = vmul.f32 %v1381, %v314
    %v1396 = vpack.c.bf16 %v1392, %v1388
    %v1397 = vpack.c.bf16 %v1393, %v1389
    %v1398 = vpack.c.bf16 %v1394, %v1390
    %v1399 = vpack.c.bf16 %v1395, %v1391
    %v1404 = vunpack.c.l.b16 %v1396
    %v1405 = vunpack.c.l.b16 %v1397
    %v1406 = vunpack.c.l.b16 %v1398
    %v1407 = vunpack.c.l.b16 %v1399
    %v1408 = vunpack.c.h.b16 %v1396
    %v1409 = vunpack.c.h.b16 %v1397
    %v1410 = vunpack.c.h.b16 %v1398
    %v1411 = vunpack.c.h.b16 %v1399
    %v1412 = vpack.c.b16 %v1405, %v1404
    %v1413 = vpack.c.b16 %v1407, %v1406
    %v1414 = vpack.c.b16 %v1409, %v1408
    %v1415 = vpack.c.b16 %v1411, %v1410
    %1420 = vst [vmem:[#allocation3 + $0x20] sm:$0xff] %v1412
    %1421 = vst [vmem:[#allocation3 + $0x28] sm:$0xff] %v1413
    %1422 = vst [vmem:[#allocation3 + $0x30] sm:$0xff] %v1414
    %1423 = vst [vmem:[#allocation3 + $0x38] sm:$0xff] %v1415
    %1424 = vrot.lane.b32.xlu0 %v1296, 15
    %v1425 = vpop.permute.xlu0 %1424
    %1426 = vrot.lane.b32.xlu0 %v1300, 15
    %v1427 = vpop.permute.xlu0 %1426
    %1428 = vrot.lane.b32.xlu0 %v1297, 15
    %v1429 = vpop.permute.xlu0 %1428
    %1430 = vrot.lane.b32.xlu0 %v1301, 15
    %v1431 = vpop.permute.xlu0 %1430
    %1432 = vrot.lane.b32.xlu0 %v1298, 15
    %v1433 = vpop.permute.xlu0 %1432
    %1434 = vrot.lane.b32.xlu0 %v1302, 15
    %v1435 = vpop.permute.xlu0 %1434
    %1436 = vrot.lane.b32.xlu0 %v1299, 15
    %v1437 = vpop.permute.xlu0 %1436
    %1438 = vrot.lane.b32.xlu0 %v1303, 15
    %v1439 = vpop.permute.xlu0 %1438
    %v1440 = vsel %vm367, %v1433, %v1437
    %v1441 = vsel %vm367, %v1435, %v1439
    %v1442 = vsel %vm367, %v1429, %v1433
    %v1443 = vsel %vm367, %v1431, %v1435
    %v1444 = vsel %vm367, %v1425, %v1429
    %v1445 = vsel %vm367, %v1427, %v1431
    %v1446 = vsel %vm367, %v1437, %v1425
    %v1447 = vsel %vm367, %v1439, %v1427
    %v1448 = vmul.f32 %v1446, %v379
    %v1449 = vmul.f32 %v1444, %v383
    %v1450 = vmul.f32 %v1442, %v387
    %v1451 = vmul.f32 %v1440, %v391
    %v1452 = vmul.f32 %v1447, %v379
    %v1453 = vmul.f32 %v1445, %v383
    %v1454 = vmul.f32 %v1443, %v387
    %v1455 = vmul.f32 %v1441, %v391
    %v1456 = vpack.c.bf16 %v1452, %v1448
    %v1457 = vpack.c.bf16 %v1453, %v1449
    %v1458 = vpack.c.bf16 %v1454, %v1450
    %v1459 = vpack.c.bf16 %v1455, %v1451
    %v1464 = vunpack.c.l.b16 %v1456
    %v1465 = vunpack.c.l.b16 %v1457
    %v1466 = vunpack.c.l.b16 %v1458
    %v1467 = vunpack.c.l.b16 %v1459
    %v1468 = vunpack.c.h.b16 %v1456
    %v1469 = vunpack.c.h.b16 %v1457
    %v1470 = vunpack.c.h.b16 %v1458
    %v1471 = vunpack.c.h.b16 %v1459
    %v1472 = vpack.c.b16 %v1465, %v1464
    %v1473 = vpack.c.b16 %v1467, %v1466
    %v1474 = vpack.c.b16 %v1469, %v1468
    %v1475 = vpack.c.b16 %v1471, %v1470
    %1480 = vst [vmem:[#allocation3 + $0x40] sm:$0xff] %v1472
    %1481 = vst [vmem:[#allocation3 + $0x48] sm:$0xff] %v1473
    %1482 = vst [vmem:[#allocation3 + $0x50] sm:$0xff] %v1474
    %1483 = vst [vmem:[#allocation3 + $0x58] sm:$0xff] %v1475
    %1484 = vrot.lane.b32.xlu0 %v1296, 1
    %v1485 = vpop.permute.xlu0 %1484
    %1486 = vrot.lane.b32.xlu0 %v1300, 1
    %v1487 = vpop.permute.xlu0 %1486
    %1488 = vrot.lane.b32.xlu0 %v1297, 1
    %v1489 = vpop.permute.xlu0 %1488
    %1490 = vrot.lane.b32.xlu0 %v1301, 1
    %v1491 = vpop.permute.xlu0 %1490
    %1492 = vrot.lane.b32.xlu0 %v1298, 1
    %v1493 = vpop.permute.xlu0 %1492
    %1494 = vrot.lane.b32.xlu0 %v1302, 1
    %v1495 = vpop.permute.xlu0 %1494
    %1496 = vrot.lane.b32.xlu0 %v1299, 1
    %v1497 = vpop.permute.xlu0 %1496
    %1498 = vrot.lane.b32.xlu0 %v1303, 1
    %v1499 = vpop.permute.xlu0 %1498
    %v1500 = vsel %vm444, %v1493, %v1497
    %v1501 = vsel %vm444, %v1495, %v1499
    %v1502 = vsel %vm444, %v1489, %v1493
    %v1503 = vsel %vm444, %v1491, %v1495
    %v1504 = vsel %vm444, %v1485, %v1489
    %v1505 = vsel %vm444, %v1487, %v1491
    %v1506 = vsel %vm444, %v1497, %v1485
    %v1507 = vsel %vm444, %v1499, %v1487
    %v1508 = vmul.f32 %v1506, %v456
    %v1509 = vmul.f32 %v1504, %v460
    %v1510 = vmul.f32 %v1502, %v464
    %v1511 = vmul.f32 %v1500, %v468
    %v1512 = vmul.f32 %v1507, %v456
    %v1513 = vmul.f32 %v1505, %v460
    %v1514 = vmul.f32 %v1503, %v464
    %v1515 = vmul.f32 %v1501, %v468
    %v1516 = vpack.c.bf16 %v1512, %v1508
    %v1517 = vpack.c.bf16 %v1513, %v1509
    %v1518 = vpack.c.bf16 %v1514, %v1510
    %v1519 = vpack.c.bf16 %v1515, %v1511
    %v1524 = vunpack.c.l.b16 %v1516
    %v1525 = vunpack.c.l.b16 %v1517
    %v1526 = vunpack.c.l.b16 %v1518
    %v1527 = vunpack.c.l.b16 %v1519
    %v1528 = vunpack.c.h.b16 %v1516
    %v1529 = vunpack.c.h.b16 %v1517
    %v1530 = vunpack.c.h.b16 %v1518
    %v1531 = vunpack.c.h.b16 %v1519
    %v1532 = vpack.c.b16 %v1525, %v1524
    %v1533 = vpack.c.b16 %v1527, %v1526
    %v1534 = vpack.c.b16 %v1529, %v1528
    %v1535 = vpack.c.b16 %v1531, %v1530
    %1540 = vst [vmem:[#allocation3 + $0x60] sm:$0xff] %v1532
    %1541 = vst [vmem:[#allocation3 + $0x68] sm:$0xff] %v1533
    %1542 = vst [vmem:[#allocation3 + $0x70] sm:$0xff] %v1534
    %1543 = vst [vmem:[#allocation3 + $0x78] sm:$0xff] %v1535
    %v1544 = vpack.c.bf16 %v1300, %v1296
    %v1545 = vpack.c.bf16 %v1301, %v1297
    %v1546 = vpack.c.bf16 %v1302, %v1298
    %v1547 = vpack.c.bf16 %v1303, %v1299
    %v1552 = vunpack.c.l.b16 %v1544
    %v1553 = vunpack.c.l.b16 %v1545
    %v1554 = vunpack.c.l.b16 %v1546
    %v1555 = vunpack.c.l.b16 %v1547
    %v1556 = vunpack.c.h.b16 %v1544
    %v1557 = vunpack.c.h.b16 %v1545
    %v1558 = vunpack.c.h.b16 %v1546
    %v1559 = vunpack.c.h.b16 %v1547
    %v1560 = vpack.c.b16 %v1553, %v1552
    %v1561 = vpack.c.b16 %v1555, %v1554
    %v1562 = vpack.c.b16 %v1557, %v1556
    %v1563 = vpack.c.b16 %v1559, %v1558
    %1568 = vst [vmem:[#allocation3 + $0x80] sm:$0xff] %v1560
    %1569 = vst [vmem:[#allocation3 + $0x88] sm:$0xff] %v1561
    %1570 = vst [vmem:[#allocation3 + $0x90] sm:$0xff] %v1562
    %1571 = vst [vmem:[#allocation3 + $0x98] sm:$0xff] %v1563
    %1572 = vrot.lane.b32.xlu0 %v1296, 127
    %v1573 = vpop.permute.xlu0 %1572
    %1574 = vrot.lane.b32.xlu0 %v1300, 127
    %v1575 = vpop.permute.xlu0 %1574
    %1576 = vrot.lane.b32.xlu0 %v1297, 127
    %v1577 = vpop.permute.xlu0 %1576
    %1578 = vrot.lane.b32.xlu0 %v1301, 127
    %v1579 = vpop.permute.xlu0 %1578
    %1580 = vrot.lane.b32.xlu0 %v1298, 127
    %v1581 = vpop.permute.xlu0 %1580
    %1582 = vrot.lane.b32.xlu0 %v1302, 127
    %v1583 = vpop.permute.xlu0 %1582
    %1584 = vrot.lane.b32.xlu0 %v1299, 127
    %v1585 = vpop.permute.xlu0 %1584
    %1586 = vrot.lane.b32.xlu0 %v1303, 127
    %v1587 = vpop.permute.xlu0 %1586
    %v1588 = vsel %vm549, %v1581, %v1585
    %v1589 = vsel %vm549, %v1583, %v1587
    %v1590 = vsel %vm549, %v1577, %v1581
    %v1591 = vsel %vm549, %v1579, %v1583
    %v1592 = vsel %vm549, %v1573, %v1577
    %v1593 = vsel %vm549, %v1575, %v1579
    %v1594 = vsel %vm549, %v1585, %v1573
    %v1595 = vsel %vm549, %v1587, %v1575
    %v1596 = vmul.f32 %v1592, %v561
    %v1597 = vmul.f32 %v1590, %v565
    %v1598 = vmul.f32 %v1588, %v569
    %v1599 = vmul.f32 %v1594, %v573
    %v1600 = vmul.f32 %v1593, %v561
    %v1601 = vmul.f32 %v1591, %v565
    %v1602 = vmul.f32 %v1589, %v569
    %v1603 = vmul.f32 %v1595, %v573
    %v1604 = vpack.c.bf16 %v1600, %v1596
    %v1605 = vpack.c.bf16 %v1601, %v1597
    %v1606 = vpack.c.bf16 %v1602, %v1598
    %v1607 = vpack.c.bf16 %v1603, %v1599
    %v1612 = vunpack.c.l.b16 %v1604
    %v1613 = vunpack.c.l.b16 %v1605
    %v1614 = vunpack.c.l.b16 %v1606
    %v1615 = vunpack.c.l.b16 %v1607
    %v1616 = vunpack.c.h.b16 %v1604
    %v1617 = vunpack.c.h.b16 %v1605
    %v1618 = vunpack.c.h.b16 %v1606
    %v1619 = vunpack.c.h.b16 %v1607
    %v1620 = vpack.c.b16 %v1613, %v1612
    %v1621 = vpack.c.b16 %v1615, %v1614
    %v1622 = vpack.c.b16 %v1617, %v1616
    %v1623 = vpack.c.b16 %v1619, %v1618
    %1628 = vst [vmem:[#allocation3 + $0xa0] sm:$0xff] %v1620
    %1629 = vst [vmem:[#allocation3 + $0xa8] sm:$0xff] %v1621
    %1630 = vst [vmem:[#allocation3 + $0xb0] sm:$0xff] %v1622
    %1631 = vst [vmem:[#allocation3 + $0xb8] sm:$0xff] %v1623
    %1632 = vrot.lane.b32.xlu0 %v1296, 113
    %v1633 = vpop.permute.xlu0 %1632
    %1634 = vrot.lane.b32.xlu0 %v1300, 113
    %v1635 = vpop.permute.xlu0 %1634
    %1636 = vrot.lane.b32.xlu0 %v1297, 113
    %v1637 = vpop.permute.xlu0 %1636
    %1638 = vrot.lane.b32.xlu0 %v1301, 113
    %v1639 = vpop.permute.xlu0 %1638
    %1640 = vrot.lane.b32.xlu0 %v1298, 113
    %v1641 = vpop.permute.xlu0 %1640
    %1642 = vrot.lane.b32.xlu0 %v1302, 113
    %v1643 = vpop.permute.xlu0 %1642
    %1644 = vrot.lane.b32.xlu0 %v1299, 113
    %v1645 = vpop.permute.xlu0 %1644
    %1646 = vrot.lane.b32.xlu0 %v1303, 113
    %v1647 = vpop.permute.xlu0 %1646
    %v1648 = vsel %vm626, %v1641, %v1645
    %v1649 = vsel %vm626, %v1643, %v1647
    %v1650 = vsel %vm626, %v1637, %v1641
    %v1651 = vsel %vm626, %v1639, %v1643
    %v1652 = vsel %vm626, %v1633, %v1637
    %v1653 = vsel %vm626, %v1635, %v1639
    %v1654 = vsel %vm626, %v1645, %v1633
    %v1655 = vsel %vm626, %v1647, %v1635
    %v1656 = vmul.f32 %v1652, %v638
    %v1657 = vmul.f32 %v1650, %v642
    %v1658 = vmul.f32 %v1648, %v646
    %v1659 = vmul.f32 %v1654, %v650
    %v1660 = vmul.f32 %v1653, %v638
    %v1661 = vmul.f32 %v1651, %v642
    %v1662 = vmul.f32 %v1649, %v646
    %v1663 = vmul.f32 %v1655, %v650
    %v1664 = vpack.c.bf16 %v1660, %v1656
    %v1665 = vpack.c.bf16 %v1661, %v1657
    %v1666 = vpack.c.bf16 %v1662, %v1658
    %v1667 = vpack.c.bf16 %v1663, %v1659
    %v1672 = vunpack.c.l.b16 %v1664
    %v1673 = vunpack.c.l.b16 %v1665
    %v1674 = vunpack.c.l.b16 %v1666
    %v1675 = vunpack.c.l.b16 %v1667
    %v1676 = vunpack.c.h.b16 %v1664
    %v1677 = vunpack.c.h.b16 %v1665
    %v1678 = vunpack.c.h.b16 %v1666
    %v1679 = vunpack.c.h.b16 %v1667
    %v1680 = vpack.c.b16 %v1673, %v1672
    %v1681 = vpack.c.b16 %v1675, %v1674
    %v1682 = vpack.c.b16 %v1677, %v1676
    %v1683 = vpack.c.b16 %v1679, %v1678
    %1688 = vst [vmem:[#allocation3 + $0xc0] sm:$0xff] %v1680
    %1689 = vst [vmem:[#allocation3 + $0xc8] sm:$0xff] %v1681
    %1690 = vst [vmem:[#allocation3 + $0xd0] sm:$0xff] %v1682
    %1691 = vst [vmem:[#allocation3 + $0xd8] sm:$0xff] %v1683
    %1692 = vrot.lane.b32.xlu0 %v1296, 112
    %v1693 = vpop.permute.xlu0 %1692
    %1694 = vrot.lane.b32.xlu0 %v1300, 112
    %v1695 = vpop.permute.xlu0 %1694
    %1696 = vrot.lane.b32.xlu0 %v1297, 112
    %v1697 = vpop.permute.xlu0 %1696
    %1698 = vrot.lane.b32.xlu0 %v1301, 112
    %v1699 = vpop.permute.xlu0 %1698
    %1700 = vrot.lane.b32.xlu0 %v1298, 112
    %v1701 = vpop.permute.xlu0 %1700
    %1702 = vrot.lane.b32.xlu0 %v1302, 112
    %v1703 = vpop.permute.xlu0 %1702
    %1704 = vrot.lane.b32.xlu0 %v1299, 112
    %v1705 = vpop.permute.xlu0 %1704
    %1706 = vrot.lane.b32.xlu0 %v1303, 112
    %v1707 = vpop.permute.xlu0 %1706
    %v1708 = vsel %vm703, %v1701, %v1705
    %v1709 = vsel %vm703, %v1703, %v1707
    %v1710 = vsel %vm703, %v1697, %v1701
    %v1711 = vsel %vm703, %v1699, %v1703
    %v1712 = vsel %vm703, %v1693, %v1697
    %v1713 = vsel %vm703, %v1695, %v1699
    %v1714 = vsel %vm703, %v1705, %v1693
    %v1715 = vsel %vm703, %v1707, %v1695
    %v1716 = vmul.f32 %v1712, %v715
    %v1717 = vmul.f32 %v1710, %v719
    %v1718 = vmul.f32 %v1708, %v723
    %v1719 = vmul.f32 %v1714, %v727
    %v1720 = vmul.f32 %v1713, %v715
    %v1721 = vmul.f32 %v1711, %v719
    %v1722 = vmul.f32 %v1709, %v723
    %v1723 = vmul.f32 %v1715, %v727
    %v1724 = vpack.c.bf16 %v1720, %v1716
    %v1725 = vpack.c.bf16 %v1721, %v1717
    %v1726 = vpack.c.bf16 %v1722, %v1718
    %v1727 = vpack.c.bf16 %v1723, %v1719
    %v1732 = vunpack.c.l.b16 %v1724
    %v1733 = vunpack.c.l.b16 %v1725
    %v1734 = vunpack.c.l.b16 %v1726
    %v1735 = vunpack.c.l.b16 %v1727
    %v1736 = vunpack.c.h.b16 %v1724
    %v1737 = vunpack.c.h.b16 %v1725
    %v1738 = vunpack.c.h.b16 %v1726
    %v1739 = vunpack.c.h.b16 %v1727
    %v1740 = vpack.c.b16 %v1733, %v1732
    %v1741 = vpack.c.b16 %v1735, %v1734
    %v1742 = vpack.c.b16 %v1737, %v1736
    %v1743 = vpack.c.b16 %v1739, %v1738
    %1748 = vst [vmem:[#allocation3 + $0xe0] sm:$0xff] %v1740
    %1749 = vst [vmem:[#allocation3 + $0xe8] sm:$0xff] %v1741
    %1750 = vst [vmem:[#allocation3 + $0xf0] sm:$0xff] %v1742
    %1751 = vst [vmem:[#allocation3 + $0xf8] sm:$0xff] %v1743
    %1752 = vrot.lane.b32.xlu0 %v1296, 111
    %v1753 = vpop.permute.xlu0 %1752
    %1754 = vrot.lane.b32.xlu0 %v1300, 111
    %v1755 = vpop.permute.xlu0 %1754
    %1756 = vrot.lane.b32.xlu0 %v1297, 111
    %v1757 = vpop.permute.xlu0 %1756
    %1758 = vrot.lane.b32.xlu0 %v1301, 111
    %v1759 = vpop.permute.xlu0 %1758
    %1760 = vrot.lane.b32.xlu0 %v1298, 111
    %v1761 = vpop.permute.xlu0 %1760
    %1762 = vrot.lane.b32.xlu0 %v1302, 111
    %v1763 = vpop.permute.xlu0 %1762
    %1764 = vrot.lane.b32.xlu0 %v1299, 111
    %v1765 = vpop.permute.xlu0 %1764
    %1766 = vrot.lane.b32.xlu0 %v1303, 111
    %v1767 = vpop.permute.xlu0 %1766
    %v1768 = vsel %vm780, %v1761, %v1765
    %v1769 = vsel %vm780, %v1763, %v1767
    %v1770 = vsel %vm780, %v1757, %v1761
    %v1771 = vsel %vm780, %v1759, %v1763
    %v1772 = vsel %vm780, %v1753, %v1757
    %v1773 = vsel %vm780, %v1755, %v1759
    %v1774 = vsel %vm780, %v1765, %v1753
    %v1775 = vsel %vm780, %v1767, %v1755
    %v1776 = vmul.f32 %v1772, %v792
    %v1777 = vmul.f32 %v1770, %v796
    %v1778 = vmul.f32 %v1768, %v800
    %v1779 = vmul.f32 %v1774, %v804
    %v1780 = vmul.f32 %v1773, %v792
    %v1781 = vmul.f32 %v1771, %v796
    %v1782 = vmul.f32 %v1769, %v800
    %v1783 = vmul.f32 %v1775, %v804
    %v1784 = vpack.c.bf16 %v1780, %v1776
    %v1785 = vpack.c.bf16 %v1781, %v1777
    %v1786 = vpack.c.bf16 %v1782, %v1778
    %v1787 = vpack.c.bf16 %v1783, %v1779
    %v1792 = vunpack.c.l.b16 %v1784
    %v1793 = vunpack.c.l.b16 %v1785
    %v1794 = vunpack.c.l.b16 %v1786
    %v1795 = vunpack.c.l.b16 %v1787
    %v1796 = vunpack.c.h.b16 %v1784
    %v1797 = vunpack.c.h.b16 %v1785
    %v1798 = vunpack.c.h.b16 %v1786
    %v1799 = vunpack.c.h.b16 %v1787
    %v1800 = vpack.c.b16 %v1793, %v1792
    %v1801 = vpack.c.b16 %v1795, %v1794
    %v1802 = vpack.c.b16 %v1797, %v1796
    %v1803 = vpack.c.b16 %v1799, %v1798
    %1808 = vst [vmem:[#allocation3 + $0x100] sm:$0xff] %v1800
    %1809 = vst [vmem:[#allocation3 + $0x108] sm:$0xff] %v1801
    %1810 = vst [vmem:[#allocation3 + $0x110] sm:$0xff] %v1802
    %1811 = vst [vmem:[#allocation3 + $0x118] sm:$0xff] %v1803
    %v1812 = vld [vmem:[#allocation3] sm:$0xff]
    %v1813 = vld [vmem:[#allocation3 + $0x8] sm:$0xff]
    %v1814 = vld [vmem:[#allocation3 + $0x10] sm:$0xff]
    %v1815 = vld [vmem:[#allocation3 + $0x18] sm:$0xff]
    %v1816 = vld [vmem:[#allocation3 + $0x20] sm:$0xff]
    %v1817 = vld [vmem:[#allocation3 + $0x28] sm:$0xff]
    %v1818 = vld [vmem:[#allocation3 + $0x30] sm:$0xff]
    %v1819 = vld [vmem:[#allocation3 + $0x38] sm:$0xff]
    %v1820 = vld [vmem:[#allocation3 + $0x40] sm:$0xff]
    %v1821 = vld [vmem:[#allocation3 + $0x48] sm:$0xff]
    %v1822 = vld [vmem:[#allocation3 + $0x50] sm:$0xff]
    %v1823 = vld [vmem:[#allocation3 + $0x58] sm:$0xff]
    %v1824 = vld [vmem:[#allocation3 + $0x60] sm:$0xff]
    %v1825 = vld [vmem:[#allocation3 + $0x68] sm:$0xff]
    %v1826 = vld [vmem:[#allocation3 + $0x70] sm:$0xff]
    %v1827 = vld [vmem:[#allocation3 + $0x78] sm:$0xff]
    %v1828 = vld [vmem:[#allocation3 + $0x80] sm:$0xff]
    %v1829 = vld [vmem:[#allocation3 + $0x88] sm:$0xff]
    %v1830 = vld [vmem:[#allocation3 + $0x90] sm:$0xff]
    %v1831 = vld [vmem:[#allocation3 + $0x98] sm:$0xff]
    %v1832 = vld [vmem:[#allocation3 + $0xa0] sm:$0xff]
    %v1833 = vld [vmem:[#allocation3 + $0xa8] sm:$0xff]
    %v1834 = vld [vmem:[#allocation3 + $0xb0] sm:$0xff]
    %v1835 = vld [vmem:[#allocation3 + $0xb8] sm:$0xff]
    %v1836 = vld [vmem:[#allocation3 + $0xc0] sm:$0xff]
    %v1837 = vld [vmem:[#allocation3 + $0xc8] sm:$0xff]
    %v1838 = vld [vmem:[#allocation3 + $0xd0] sm:$0xff]
    %v1839 = vld [vmem:[#allocation3 + $0xd8] sm:$0xff]
    %v1840 = vld [vmem:[#allocation3 + $0xe0] sm:$0xff]
    %v1841 = vld [vmem:[#allocation3 + $0xe8] sm:$0xff]
    %v1842 = vld [vmem:[#allocation3 + $0xf0] sm:$0xff]
    %v1843 = vld [vmem:[#allocation3 + $0xf8] sm:$0xff]
    %v1844 = vld [vmem:[#allocation3 + $0x100] sm:$0xff]
    %v1845 = vld [vmem:[#allocation3 + $0x108] sm:$0xff]
    %v1846 = vld [vmem:[#allocation3 + $0x110] sm:$0xff]
    %v1847 = vld [vmem:[#allocation3 + $0x118] sm:$0xff]
    %v1848 = vld [vmem:[%s8] sm:$0xff]
    %v1849 = vld [vmem:[%s9] sm:$0xff]
    %1851 = vset.pattern.permute.xlu0 0
    %1852 = vperm.xlu0 %1851, %v1849
    %v1853 = vpop.permute.xlu0 %1852
    %v1856 = vunpack.c.l.b16 %v1848
    %v1857 = vunpack.c.h.b16 %v1848
    %v1858 = vpack.c.b16 %v1856, %v1856
    %v1859 = vpack.c.b16 %v1857, %v1857
    %v1897 = vunpack.c.l.b16 %v1812
    %v1898 = vunpack.c.h.b16 %v1812
    %v1899 = vunpack.c.l.b16 %v1813
    %v1900 = vunpack.c.h.b16 %v1813
    %v1901 = vunpack.c.l.b16 %v1814
    %v1902 = vunpack.c.h.b16 %v1814
    %v1903 = vunpack.c.l.b16 %v1815
    %v1904 = vunpack.c.h.b16 %v1815
    %v1905 = vunpack.c.l.b16 %v1816
    %v1906 = vunpack.c.h.b16 %v1816
    %v1907 = vunpack.c.l.b16 %v1817
    %v1908 = vunpack.c.h.b16 %v1817
    %v1909 = vunpack.c.l.b16 %v1818
    %v1910 = vunpack.c.h.b16 %v1818
    %v1911 = vunpack.c.l.b16 %v1819
    %v1912 = vunpack.c.h.b16 %v1819
    %v1913 = vunpack.c.l.b16 %v1820
    %v1914 = vunpack.c.h.b16 %v1820
    %v1915 = vunpack.c.l.b16 %v1821
    %v1916 = vunpack.c.h.b16 %v1821
    %v1917 = vunpack.c.l.b16 %v1822
    %v1918 = vunpack.c.h.b16 %v1822
    %v1919 = vunpack.c.l.b16 %v1823
    %v1920 = vunpack.c.h.b16 %v1823
    %v1921 = vunpack.c.l.b16 %v1824
    %v1922 = vunpack.c.h.b16 %v1824
    %v1923 = vunpack.c.l.b16 %v1825
    %v1924 = vunpack.c.h.b16 %v1825
    %v1925 = vunpack.c.l.b16 %v1826
    %v1926 = vunpack.c.h.b16 %v1826
    %v1927 = vunpack.c.l.b16 %v1827
    %v1928 = vunpack.c.h.b16 %v1827
    %v1929 = vunpack.c.l.b16 %v1828
    %v1930 = vunpack.c.h.b16 %v1828
    %v1931 = vunpack.c.l.b16 %v1829
    %v1932 = vunpack.c.h.b16 %v1829
    %v1933 = vunpack.c.l.b16 %v1830
    %v1934 = vunpack.c.h.b16 %v1830
    %v1935 = vunpack.c.l.b16 %v1831
    %v1936 = vunpack.c.h.b16 %v1831
    %v1937 = vunpack.c.l.b16 %v1832
    %v1938 = vunpack.c.h.b16 %v1832
    %v1939 = vunpack.c.l.b16 %v1833
    %v1940 = vunpack.c.h.b16 %v1833
    %v1941 = vunpack.c.l.b16 %v1834
    %v1942 = vunpack.c.h.b16 %v1834
    %v1943 = vunpack.c.l.b16 %v1835
    %v1944 = vunpack.c.h.b16 %v1835
    %v1945 = vunpack.c.l.b16 %v1836
    %v1946 = vunpack.c.h.b16 %v1836
    %v1947 = vunpack.c.l.b16 %v1837
    %v1948 = vunpack.c.h.b16 %v1837
    %v1949 = vunpack.c.l.b16 %v1838
    %v1950 = vunpack.c.h.b16 %v1838
    %v1951 = vunpack.c.l.b16 %v1839
    %v1952 = vunpack.c.h.b16 %v1839
    %v1953 = vunpack.c.l.b16 %v1840
    %v1954 = vunpack.c.h.b16 %v1840
    %v1955 = vunpack.c.l.b16 %v1841
    %v1956 = vunpack.c.h.b16 %v1841
    %v1957 = vunpack.c.l.b16 %v1842
    %v1958 = vunpack.c.h.b16 %v1842
    %v1959 = vunpack.c.l.b16 %v1843
    %v1960 = vunpack.c.h.b16 %v1843
    %v1961 = vunpack.c.l.b16 %v1844
    %v1962 = vunpack.c.h.b16 %v1844
    %v1963 = vunpack.c.l.b16 %v1845
    %v1964 = vunpack.c.h.b16 %v1845
    %v1965 = vunpack.c.l.b16 %v1846
    %v1966 = vunpack.c.h.b16 %v1846
    %v1967 = vunpack.c.l.b16 %v1847
    %v1968 = vunpack.c.h.b16 %v1847
    %v1969 = vpack.c.b16 %v1901, %v1897
    %v1970 = vpack.c.b16 %v1902, %v1898
    %v1971 = vpack.c.b16 %v1903, %v1899
    %v1972 = vpack.c.b16 %v1904, %v1900
    %v1973 = vpack.c.b16 %v1909, %v1905
    %v1974 = vpack.c.b16 %v1910, %v1906
    %v1975 = vpack.c.b16 %v1911, %v1907
    %v1976 = vpack.c.b16 %v1912, %v1908
    %v1977 = vpack.c.b16 %v1917, %v1913
    %v1978 = vpack.c.b16 %v1918, %v1914
    %v1979 = vpack.c.b16 %v1919, %v1915
    %v1980 = vpack.c.b16 %v1920, %v1916
    %v1981 = vpack.c.b16 %v1925, %v1921
    %v1982 = vpack.c.b16 %v1926, %v1922
    %v1983 = vpack.c.b16 %v1927, %v1923
    %v1984 = vpack.c.b16 %v1928, %v1924
    %v1985 = vpack.c.b16 %v1933, %v1929
    %v1986 = vpack.c.b16 %v1934, %v1930
    %v1987 = vpack.c.b16 %v1935, %v1931
    %v1988 = vpack.c.b16 %v1936, %v1932
    %v1989 = vpack.c.b16 %v1941, %v1937
    %v1990 = vpack.c.b16 %v1942, %v1938
    %v1991 = vpack.c.b16 %v1943, %v1939
    %v1992 = vpack.c.b16 %v1944, %v1940
    %v1993 = vpack.c.b16 %v1949, %v1945
    %v1994 = vpack.c.b16 %v1950, %v1946
    %v1995 = vpack.c.b16 %v1951, %v1947
    %v1996 = vpack.c.b16 %v1952, %v1948
    %v1997 = vpack.c.b16 %v1957, %v1953
    %v1998 = vpack.c.b16 %v1958, %v1954
    %v1999 = vpack.c.b16 %v1959, %v1955
    %v2000 = vpack.c.b16 %v1960, %v1956
    %v2001 = vpack.c.b16 %v1965, %v1961
    %v2002 = vpack.c.b16 %v1966, %v1962
    %v2003 = vpack.c.b16 %v1967, %v1963
    %v2004 = vpack.c.b16 %v1968, %v1964
    %v2042 = vsel %vm1080, %v1859, 0
    %2044 = vmatprep.subr.bf16.mxu0 %v1998
    %2045 = vmatpush1.bf16.msra.mxu0 %v1997
    %2046 = vmatprep.subr.bf16.mxu0 %v1994
    %2047 = vmatpush1.bf16.msra.mxu0 %v1993
    %2048 = vmatprep.subr.bf16.mxu0 %v1990
    %2049 = vmatpush1.bf16.msra.mxu0 %v1989
    %2050 = vmatprep.subr.bf16.mxu0 %v1986
    %2051 = vmatpush1.bf16.msra.mxu0 %v1985
    %2052 = vmatprep.subr.bf16.mxu0 %v1982
    %2053 = vmatpush1.bf16.msra.mxu0 %v1981
    %2054 = vmatprep.subr.bf16.mxu0 %v1978
    %2055 = vmatpush1.bf16.msra.mxu0 %v1977
    %2056 = vmatprep.subr.bf16.mxu0 %v1974
    %2057 = vmatpush1.bf16.msra.mxu0 %v1973
    %2058 = vmatprep.subr.bf16.mxu0 %v1970
    %2059 = vmatpush1.bf16.msra.mxu0 %v1969
    %2060 = vmatprep.subr.bf16.mxu0 0
    %2061 = vmatpush2.bf16.msra.mxu0 0
    %2062 = vmatprep.subr.bf16.mxu0 0
    %2063 = vmatpush2.bf16.msra.mxu0 0
    %2064 = vmatprep.subr.bf16.mxu0 0
    %2065 = vmatpush2.bf16.msra.mxu0 0
    %2066 = vmatprep.subr.bf16.mxu0 0
    %2067 = vmatpush2.bf16.msra.mxu0 0
    %2068 = vmatprep.subr.bf16.mxu0 0
    %2069 = vmatpush2.bf16.msra.mxu0 0
    %2070 = vmatprep.subr.bf16.mxu0 0
    %2071 = vmatpush2.bf16.msra.mxu0 0
    %2072 = vmatprep.subr.bf16.mxu0 0
    %2073 = vmatpush2.bf16.msra.mxu0 0
    %2074 = vmatprep.subr.bf16.mxu0 %v2002
    %2075 = vmatpush2.bf16.msra.mxu0 %v2001
    %2076 = vmatprep.mubr.bf16.mxu0 %v2042
    %2077 = vmatmul.mubr.bf16.gmra.mxu0 %v1858
    %v2078 = vpop.f32.mrf.mxu0
    %v2079 = vadd.f32 %v1853, %v2078
    %v2080 = vpop.f32.mrf.mxu0
    %v2081 = vadd.f32 %v1853, %v2080
    %v2082 = vpop.f32.mrf.mxu0
    %v2083 = vpop.f32.mrf.mxu0
    %2084 = vdwg.mxu0
    %2085 = vmatprep.subr.bf16.mxu0 %v2000
    %2086 = vmatpush1.bf16.msra.mxu0 %v1999
    %2087 = vmatprep.subr.bf16.mxu0 %v1996
    %2088 = vmatpush1.bf16.msra.mxu0 %v1995
    %2089 = vmatprep.subr.bf16.mxu0 %v1992
    %2090 = vmatpush1.bf16.msra.mxu0 %v1991
    %2091 = vmatprep.subr.bf16.mxu0 %v1988
    %2092 = vmatpush1.bf16.msra.mxu0 %v1987
    %2093 = vmatprep.subr.bf16.mxu0 %v1984
    %2094 = vmatpush1.bf16.msra.mxu0 %v1983
    %2095 = vmatprep.subr.bf16.mxu0 %v1980
    %2096 = vmatpush1.bf16.msra.mxu0 %v1979
    %2097 = vmatprep.subr.bf16.mxu0 %v1976
    %2098 = vmatpush1.bf16.msra.mxu0 %v1975
    %2099 = vmatprep.subr.bf16.mxu0 %v1972
    %2100 = vmatpush1.bf16.msra.mxu0 %v1971
    %2101 = vmatprep.subr.bf16.mxu0 0
    %2102 = vmatpush2.bf16.msra.mxu0 0
    %2103 = vmatprep.subr.bf16.mxu0 0
    %2104 = vmatpush2.bf16.msra.mxu0 0
    %2105 = vmatprep.subr.bf16.mxu0 0
    %2106 = vmatpush2.bf16.msra.mxu0 0
    %2107 = vmatprep.subr.bf16.mxu0 0
    %2108 = vmatpush2.bf16.msra.mxu0 0
    %2109 = vmatprep.subr.bf16.mxu0 0
    %2110 = vmatpush2.bf16.msra.mxu0 0
    %2111 = vmatprep.subr.bf16.mxu0 0
    %2112 = vmatpush2.bf16.msra.mxu0 0
    %2113 = vmatprep.subr.bf16.mxu0 0
    %2114 = vmatpush2.bf16.msra.mxu0 0
    %2115 = vmatprep.subr.bf16.mxu0 %v2004
    %2116 = vmatpush2.bf16.msra.mxu0 %v2003
    %2117 = vmatprep.mubr.bf16.mxu0 %v2042
    %2118 = vmatmul.mubr.bf16.gmra.mxu0 %v1858
    %v2119 = vpop.f32.mrf.mxu0
    %v2120 = vadd.f32 %v1853, %v2119
    %v2121 = vpop.f32.mrf.mxu0
    %v2122 = vadd.f32 %v1853, %v2121
    %v2123 = vpop.f32.mrf.mxu0
    %v2124 = vpop.f32.mrf.mxu0
    %2125 = vdwg.mxu0
    %v2126 = vadd.f32 %v2079, %v49
    %v2127 = vadd.f32 %v2081, %v50
    %v2128 = vadd.f32 %v2120, %v51
    %v2129 = vadd.f32 %v2122, %v52
    %2130 = vst [vmem:[#allocation7] sm:$0xff] %v2126
    %2131 = vst [vmem:[#allocation7 + $0x8] sm:$0xff] %v2127
    %2132 = vst [vmem:[#allocation7 + $0x10] sm:$0xff] %v2128
    %2133 = vst [vmem:[#allocation7 + $0x18] sm:$0xff] %v2129
    // Predicated region
    $region46: #{tpu_custom_call.1} parent=1 // pred_check
      _
    $region47: #{tpu_custom_call.1} parent=1 // pred_check_branch
      %2135 = sbr.rel (0) target = $region49
    $region48: #{tpu_custom_call.1} parent=1 // pred_region
      %s2137 = ssub.s32 512, 512
      %2138 = vsyncadd [#allocation6], %s2137
      %s2140 = sshll.u32 [#allocation7], 4
      %s2141 = int_to_ptr.vmem [resolvable:$true] %s2140
      %2143 = dma.vmem_to_hbm [thread:$0]  %s2141, 512, %s10, [#allocation6]
    $region49: #{tpu_custom_call.1} parent=1 // pred_fallthru
      _
    // Predicated region
    $region50: #{tpu_custom_call.1} parent=1 // pred_check
      _
    $region51: #{tpu_custom_call.1} parent=1 // pred_check_branch
      %2145 = sbr.rel (0) target = $region53
    $region52: #{tpu_custom_call.1} parent=1 // pred_region
      %2146 = dma.done [#allocation6], 512
    $region53: #{tpu_custom_call.1} parent=1 // pred_fallthru
      _
    %2147 = vsyncpa [#allocation5], 1
    %2148 = vsyncpa [#allocation6], 1

</llo_original>
